<compile_context>
chip_gen: v6e
topology: v6e:2x2x1
jax: 0.10.0
libtpu: 0.0.40
codegen_flags: <defaults>
</compile_context>

<pallas_src>
import jax
import jax.numpy as jnp
from jax import lax
from jax.experimental import pallas as pl
from jax.experimental.pallas import tpu as pltpu

# ----- module hyper-parameters (from the PyTorch script) -----
OUTPUT_DIM = 6
EMB_DIM = 10
HID_DIM = 8
N_LAYERS = 1

GATE_PAD = 128   # per-gate lane block (lane-aligned gate layout)
EMB_ROWS = 8     # vocab rows padded to one sublane group
H_OFF = 16       # lane offset where the hidden state lives inside a 128-lane block

assert EMB_DIM <= H_OFF and H_OFF + HID_DIM <= GATE_PAD


def _round_up(x, m):
    return ((x + m - 1) // m) * m


def prepare_decoder_params(params):
    """One-time packing of module parameters into MXU/lane-friendly f32 slabs."""
    E, H, O, HP = EMB_DIM, HID_DIM, OUTPUT_DIM, GATE_PAD

    w_ih_t = params["w_ih"].T.astype(jnp.float32)                  # [E, 4H]
    w_hh_t = params["w_hh"].T.astype(jnp.float32)                  # [H, 4H]
    b = (params["b_ih"] + params["b_hh"]).astype(jnp.float32)      # [4H]  (folded once)

    # Fused [W_ih^T ; W_hh^T] packed into a SINGLE 128-lane K block:
    #   rows 0..E-1        -> input weights  (x lives in z lanes 0..E-1)
    #   rows H_OFF..H_OFF+H-> hidden weights (h lives in z lanes H_OFF..H_OFF+H-1)
    # Gate g's outputs land at lanes g*HP + H_OFF .. g*HP + H_OFF + H - 1, so c/h keep the
    # same lane offset and feed straight back into the next step's z.
    w_gates = jnp.zeros((HP, 4 * HP), jnp.float32)
    b_gates = jnp.zeros((1, 4 * HP), jnp.float32)
    for g in range(4):
        c0 = g * HP + H_OFF
        w_gates = w_gates.at[0:E, c0:c0 + H].set(w_ih_t[:, g * H:(g + 1) * H])
        w_gates = w_gates.at[H_OFF:H_OFF + H, c0:c0 + H].set(w_hh_t[:, g * H:(g + 1) * H])
        b_gates = b_gates.at[0, c0:c0 + H].set(b[g * H:(g + 1) * H])

    emb = jnp.zeros((EMB_ROWS, HP), jnp.float32).at[:O, :E].set(
        params["embedding"].astype(jnp.float32))
    w_fc = jnp.zeros((HP, HP), jnp.float32).at[H_OFF:H_OFF + H, :O].set(
        params["w_fc"].T.astype(jnp.float32))
    # Log-softmax lane mask folded into the bias: padding lanes are -1e30 so exp() -> 0.
    b_fc = jnp.full((1, HP), -1e30, jnp.float32).at[0, :O].set(
        params["b_fc"].astype(jnp.float32))

    return {"emb": emb, "w_gates": w_gates, "b_gates": b_gates,
            "w_fc": w_fc, "b_fc": b_fc}


def decoder_decode(prep, token_seq, hidden, cell, *, t_chunk=None):
    """Run the decoder over a whole token sequence inside one Pallas kernel.

    token_seq : int32 [T, B]   (teacher-forced tokens, like trg)
    hidden    : f32   [1, B, H]
    cell      : f32   [1, B, H]
    returns   : (predictions [T, B, O], hidden [1, B, H], cell [1, B, H])
    """
    T, B = token_seq.shape
    HP = GATE_PAD

    # ----- time chunking (short sequences collapse to a single grid point) -----
    if t_chunk is None:
        t_chunk = min(32, _round_up(T, 8))
    n_tc = -(-T // t_chunk)
    t_pad = n_tc * t_chunk

    # ----- batch padding / tiling (>=8 sublanes; split across TCs for large batches) -----
    b_pad = _round_up(B, 8)
    if b_pad <= 8:
        tb = b_pad
    else:
        tb = _round_up(-(-b_pad // 2), 8)       # two blocks so v7x's 2nd TensorCore works
        b_pad = _round_up(b_pad, tb)
    nb = b_pad // tb

    # TODO(synk): token ids >= OUTPUT_DIM silently map to an all-zero embedding row.
    ids = jnp.zeros((t_pad, b_pad), jnp.int32).at[:T, :B].set(token_seq.astype(jnp.int32))
    ids = ids.reshape(n_tc, t_chunk, b_pad).transpose(0, 2, 1)     # [n_tc, b_pad, t_chunk]

    h0 = jnp.zeros((b_pad, HP), jnp.float32).at[:B, H_OFF:H_OFF + HID_DIM].set(hidden[0])
    c0 = jnp.zeros((b_pad, HP), jnp.float32).at[:B, H_OFF:H_OFF + HID_DIM].set(cell[0])

    def kernel(ids_ref, h0_ref, c0_ref, emb_ref, wg_ref, bg_ref, wfc_ref, bfc_ref,
               pred_ref, hout_ref, cout_ref, h_sc, c_sc):
        tc = pl.program_id(1)

        # initialize the recurrent state once per batch block
        @pl.when(tc == 0)
        def _init():
            h_sc[...] = h0_ref[...]
            c_sc[...] = c0_ref[...]

        # weights stay resident in VMEM; load once per chunk
        emb = emb_ref[...]
        wg = wg_ref[...]
        bg = bg_ref[...]
        wfc = wfc_ref[...]
        bfc = bfc_ref[...]
        ids_blk = ids_ref[0]                                       # [tb, t_chunk] int32

        vocab_iota = lax.broadcasted_iota(jnp.int32, (tb, EMB_ROWS), 1)

        h = h_sc[...]
        c = c_sc[...]

        for s in range(t_chunk):
            if n_tc == 1 and s >= T:
                break                                              # statically dead padding

            # fused embedding lookup: one_hot(ids) @ emb_table (MXU row gather)
            ids_s = ids_blk[:, s:s + 1]                            # [tb, 1]
            one_hot = (vocab_iota == ids_s).astype(jnp.float32)    # [tb, EMB_ROWS]
            # TODO(synk): nn.Dropout is identity here (eval mode).
            x = jnp.dot(one_hot, emb, preferred_element_type=jnp.float32)   # lanes [0, E)

            # packed z: x in lanes [0, E), h in lanes [H_OFF, H_OFF+H) -> K = 128
            z = x + h
            gates = jnp.dot(z, wg, preferred_element_type=jnp.float32) + bg  # [tb, 4*HP]

            i_g = jax.nn.sigmoid(gates[:, 0 * HP:1 * HP])
            f_g = jax.nn.sigmoid(gates[:, 1 * HP:2 * HP])
            g_g = jnp.tanh(gates[:, 2 * HP:3 * HP])
            o_g = jax.nn.sigmoid(gates[:, 3 * HP:4 * HP])

            # Padding lanes stay exactly zero: gates_pad = 0 -> i=f=o=0.5, g=0 -> c,h pad = 0.
            c_new = f_g * c + i_g * g_g
            h_new = o_g * jnp.tanh(c_new)

            if n_tc > 1 and t_pad != T:
                keep = (tc * t_chunk + s) < T                      # mask padded trailing steps
                h_new = jnp.where(keep, h_new, h)
                c_new = jnp.where(keep, c_new, c)
            h, c = h_new, c_new

            # output projection + log-softmax (lane mask folded into bfc)
            logits = jnp.dot(h, wfc, preferred_element_type=jnp.float32) + bfc
            m = jnp.max(logits, axis=-1, keepdims=True)
            shifted = logits - m
            lse = jnp.log(jnp.sum(jnp.exp(shifted), axis=-1, keepdims=True))
            pred_ref[s] = shifted - lse                            # lane-dense store

        # spill the carried state only at chunk boundaries
        h_sc[...] = h
        c_sc[...] = c

        @pl.when(tc == pl.num_programs(1) - 1)
        def _finalize():
            hout_ref[...] = h
            cout_ref[...] = c

    def const(shape):
        return pl.BlockSpec(shape, lambda b, t: (0, 0))

    pred_pad, h_out, c_out = pl.pallas_call(
        kernel,
        grid=(nb, n_tc),
        in_specs=[
            pl.BlockSpec((1, tb, t_chunk), lambda b, t: (t, b, 0)),  # ids chunk
            pl.BlockSpec((tb, HP), lambda b, t: (b, 0)),             # h0 (per batch block)
            pl.BlockSpec((tb, HP), lambda b, t: (b, 0)),             # c0
            const((EMB_ROWS, HP)),                                   # embedding (resident)
            const((HP, 4 * HP)),                                     # fused LSTM weight
            const((1, 4 * HP)),                                      # fused LSTM bias
            const((HP, HP)),                                         # fc weight
            const((1, HP)),                                          # fc bias (mask folded)
        ],
        out_specs=[
            pl.BlockSpec((t_chunk, tb, HP), lambda b, t: (t, b, 0)),  # per-chunk log-probs
            pl.BlockSpec((tb, HP), lambda b, t: (b, 0)),              # final hidden
            pl.BlockSpec((tb, HP), lambda b, t: (b, 0)),              # final cell
        ],
        out_shape=[
            jax.ShapeDtypeStruct((t_pad, b_pad, HP), jnp.float32),
            jax.ShapeDtypeStruct((b_pad, HP), jnp.float32),
            jax.ShapeDtypeStruct((b_pad, HP), jnp.float32),
        ],
        scratch_shapes=[
            pltpu.VMEM((tb, HP), jnp.float32),                       # h carried across chunks
            pltpu.VMEM((tb, HP), jnp.float32),                       # c carried across chunks
        ],
        compiler_params=pltpu.CompilerParams(
            dimension_semantics=("parallel", "arbitrary")),
    )(ids, h0, c0, prep["emb"], prep["w_gates"], prep["b_gates"],
      prep["w_fc"], prep["b_fc"])

    preds = pred_pad[:T, :B, :OUTPUT_DIM]
    h_new = h_out[:B, H_OFF:H_OFF + HID_DIM][None, :, :]
    c_new = c_out[:B, H_OFF:H_OFF + HID_DIM][None, :, :]
    return preds, h_new, c_new


def decoder_forward(prep, token_ids, hidden, cell):
    """Single-step forward matching Decoder.forward(input, hidden, cell)."""
    preds, h_new, c_new = decoder_decode(prep, token_ids[None, :], hidden, cell)
    return preds[0], h_new, c_new


def init_params(key):
    """Deterministic parameter init matching the PyTorch module's shapes."""
    ks = jax.random.split(key, 7)
    k = 1.0 / jnp.sqrt(HID_DIM)
    u = lambda kk, shape, scale: jax.random.uniform(
        kk, shape, jnp.float32, minval=-scale, maxval=scale)
    return {
        "embedding": jax.random.normal(ks[0], (OUTPUT_DIM, EMB_DIM), jnp.float32),
        "w_ih": u(ks[1], (4 * HID_DIM, EMB_DIM), k),
        "w_hh": u(ks[2], (4 * HID_DIM, HID_DIM), k),
        "b_ih": u(ks[3], (4 * HID_DIM,), k),
        "b_hh": u(ks[4], (4 * HID_DIM,), k),
        "w_fc": u(ks[5], (OUTPUT_DIM, HID_DIM), k),
        "b_fc": u(ks[6], (OUTPUT_DIM,), k),
    }


def reference_decode(params, token_seq, hidden, cell):
    """Pure-JAX reference (PyTorch LSTM semantics, gate order i,f,g,o)."""
    h, c = hidden[0], cell[0]
    H = HID_DIM
    b = params["b_ih"] + params["b_hh"]
    preds = []
    for t in range(token_seq.shape[0]):
        x = params["embedding"][token_seq[t]]                     # [B, E]
        gates = x @ params["w_ih"].T + h @ params["w_hh"].T + b
        i = jax.nn.sigmoid(gates[:, 0 * H:1 * H])
        f = jax.nn.sigmoid(gates[:, 1 * H:2 * H])
        g = jnp.tanh(gates[:, 2 * H:3 * H])
        o = jax.nn.sigmoid(gates[:, 3 * H:4 * H])
        c = f * c + i * g
        h = o * jnp.tanh(c)
        logits = h @ params["w_fc"].T + params["b_fc"]
        preds.append(jax.nn.log_softmax(logits, axis=-1))
    return jnp.stack(preds, axis=0), h[None], c[None]


if __name__ == "__main__":
    key = jax.random.PRNGKey(0)
    pkey, hkey, ckey = jax.random.split(key, 3)

    params = init_params(pkey)
    prep = prepare_decoder_params(params)        # one-time packing (hoisted out of forward)

    B = 2
    # teacher-forced token sequence (like trg), T=5, batch=2, ids in [0, OUTPUT_DIM)
    token_seq = jnp.array([[0, 2], [2, 3], [3, 5], [5, 1], [1, 0]], dtype=jnp.int32)
    hidden = jax.random.normal(hkey, (N_LAYERS, B, HID_DIM), jnp.float32)
    cell = jax.random.normal(ckey, (N_LAYERS, B, HID_DIM), jnp.float32)

    # full-sequence decode: one kernel launch, recurrence stays on-chip
    preds, h_new, c_new = decoder_decode(prep, token_seq, hidden, cell)
    jax.block_until_ready((preds, h_new, c_new))

    ref_p, ref_h, ref_c = reference_decode(params, token_seq, hidden, cell)

    assert preds.shape == (token_seq.shape[0], B, OUTPUT_DIM)
    assert h_new.shape == (N_LAYERS, B, HID_DIM)
    assert c_new.shape == (N_LAYERS, B, HID_DIM)
    row_sums = jnp.sum(jnp.exp(preds), axis=-1)
    assert bool(jnp.all(jnp.abs(row_sums - 1.0) < 1e-4))
    assert bool(jnp.allclose(preds, ref_p, atol=5e-4, rtol=5e-4))
    assert bool(jnp.allclose(h_new, ref_h, atol=5e-4, rtol=5e-4))
    assert bool(jnp.allclose(c_new, ref_c, atol=5e-4, rtol=5e-4))

    # single-step call matching Decoder.forward(input, hidden, cell)
    p1, h1, c1 = decoder_forward(prep, token_seq[0], hidden, cell)
    jax.block_until_ready((p1, h1, c1))
    assert p1.shape == (B, OUTPUT_DIM)
    assert bool(jnp.allclose(p1, ref_p[0], atol=5e-4, rtol=5e-4))

    print("KERNEL_OK")
</pallas_src>

<mosaic_0001>
module attributes {stable_mosaic.version = 11 : i64} {
  func.func @kernel(%arg0: i32, %arg1: i32, %arg2: memref<1x8x8xi32, #tpu.memory_space<vmem>>, %arg3: memref<8x128xf32, #tpu.memory_space<vmem>>, %arg4: memref<8x128xf32, #tpu.memory_space<vmem>>, %arg5: memref<8x128xf32, #tpu.memory_space<vmem>>, %arg6: memref<128x512xf32, #tpu.memory_space<vmem>>, %arg7: memref<1x512xf32, #tpu.memory_space<vmem>>, %arg8: memref<128x128xf32, #tpu.memory_space<vmem>>, %arg9: memref<1x128xf32, #tpu.memory_space<vmem>>, %arg10: memref<8x8x128xf32, #tpu.memory_space<vmem>>, %arg11: memref<8x128xf32, #tpu.memory_space<vmem>>, %arg12: memref<8x128xf32, #tpu.memory_space<vmem>>, %arg13: memref<8x128xf32, #tpu.memory_space<vmem>>, %arg14: memref<8x128xf32, #tpu.memory_space<vmem>>) attributes {dimension_semantics = [#tpu.dimension_semantics<parallel>, #tpu.dimension_semantics<arbitrary>], iteration_bounds = array<i64: 1, 1>, scalar_prefetch = 0 : i64, scratch_operands = 2 : i64, tpu.core_type = #tpu.core_type<tc>, window_params = [{transform_indices = @transform_0, window_bounds = array<i64: 1, 8, 8>}, {transform_indices = @transform_1, window_bounds = array<i64: 8, 128>}, {transform_indices = @transform_2, window_bounds = array<i64: 8, 128>}, {pipeline_mode = #tpu.pipeline_mode<synchronous>, transform_indices = @transform_3, window_bounds = array<i64: 8, 128>}, {pipeline_mode = #tpu.pipeline_mode<synchronous>, transform_indices = @transform_4, window_bounds = array<i64: 128, 512>}, {pipeline_mode = #tpu.pipeline_mode<synchronous>, transform_indices = @transform_5, window_bounds = array<i64: 1, 512>}, {pipeline_mode = #tpu.pipeline_mode<synchronous>, transform_indices = @transform_6, window_bounds = array<i64: 128, 128>}, {pipeline_mode = #tpu.pipeline_mode<synchronous>, transform_indices = @transform_7, window_bounds = array<i64: 1, 128>}, {transform_indices = @transform_8, window_bounds = array<i64: 8, 8, 128>}, {transform_indices = @transform_9, window_bounds = array<i64: 8, 128>}, {transform_indices = @transform_10, window_bounds = array<i64: 8, 128>}]} {
    %c0_i32 = arith.constant 0 : i32
    %0 = arith.cmpi eq, %arg1, %c0_i32 : i32
    %1 = arith.extui %0 : i1 to i32
    %c0_i32_0 = arith.constant 0 : i32
    %2 = arith.cmpi ne, %1, %c0_i32_0 : i32
    scf.if %2 {
      %c0_73 = arith.constant 0 : index
      %c0_74 = arith.constant 0 : index
      %273 = vector.load %arg3[%c0_73, %c0_74] : memref<8x128xf32, #tpu.memory_space<vmem>>, vector<8x128xf32>
      %c0_75 = arith.constant 0 : index
      %c0_76 = arith.constant 0 : index
      %274 = vector.load %arg13[%c0_75, %c0_76] : memref<8x128xf32, #tpu.memory_space<vmem>>, vector<8x128xf32>
      tpu.vector_store %arg13[%c0_75, %c0_76], %273 {strides = array<i32>} : memref<8x128xf32, #tpu.memory_space<vmem>>, vector<8x128xf32>,
      %c0_77 = arith.constant 0 : index
      %c0_78 = arith.constant 0 : index
      %275 = vector.load %arg4[%c0_77, %c0_78] : memref<8x128xf32, #tpu.memory_space<vmem>>, vector<8x128xf32>
      %c0_79 = arith.constant 0 : index
      %c0_80 = arith.constant 0 : index
      %276 = vector.load %arg14[%c0_79, %c0_80] : memref<8x128xf32, #tpu.memory_space<vmem>>, vector<8x128xf32>
      tpu.vector_store %arg14[%c0_79, %c0_80], %275 {strides = array<i32>} : memref<8x128xf32, #tpu.memory_space<vmem>>, vector<8x128xf32>,
    } else {
    }
    %c0 = arith.constant 0 : index
    %c0_1 = arith.constant 0 : index
    %3 = vector.load %arg5[%c0, %c0_1] : memref<8x128xf32, #tpu.memory_space<vmem>>, vector<8x128xf32>
    %c0_2 = arith.constant 0 : index
    %c0_3 = arith.constant 0 : index
    %4 = vector.load %arg6[%c0_2, %c0_3] : memref<128x512xf32, #tpu.memory_space<vmem>>, vector<128x512xf32>
    %c0_4 = arith.constant 0 : index
    %c0_5 = arith.constant 0 : index
    %5 = vector.load %arg7[%c0_4, %c0_5] : memref<1x512xf32, #tpu.memory_space<vmem>>, vector<1x512xf32>
    %c0_6 = arith.constant 0 : index
    %c0_7 = arith.constant 0 : index
    %6 = vector.load %arg8[%c0_6, %c0_7] : memref<128x128xf32, #tpu.memory_space<vmem>>, vector<128x128xf32>
    %c0_8 = arith.constant 0 : index
    %c0_9 = arith.constant 0 : index
    %7 = vector.load %arg9[%c0_8, %c0_9] : memref<1x128xf32, #tpu.memory_space<vmem>>, vector<1x128xf32>
    %c0_10 = arith.constant 0 : index
    %c0_11 = arith.constant 0 : index
    %c0_12 = arith.constant 0 : index
    %8 = vector.load %arg2[%c0_10, %c0_11, %c0_12] : memref<1x8x8xi32, #tpu.memory_space<vmem>>, vector<1x8x8xi32>
    %9 = vector.shape_cast %8 : vector<1x8x8xi32> to vector<8x8xi32>
    %10 = tpu.iota {dimensions = array<i32: 1>} : vector<8x8xi32>
    %c0_13 = arith.constant 0 : index
    %c0_14 = arith.constant 0 : index
    %11 = vector.load %arg13[%c0_13, %c0_14] : memref<8x128xf32, #tpu.memory_space<vmem>>, vector<8x128xf32>
    %c0_15 = arith.constant 0 : index
    %c0_16 = arith.constant 0 : index
    %12 = vector.load %arg14[%c0_15, %c0_16] : memref<8x128xf32, #tpu.memory_space<vmem>>, vector<8x128xf32>
    %13 = vector.extract_strided_slice %9 {offsets = [0, 0], sizes = [8, 1], strides = [1, 1]} : vector<8x8xi32> to vector<8x1xi32>
    %14 = vector.broadcast %13 : vector<8x1xi32> to vector<8x8xi32>
    %15 = arith.cmpi eq, %10, %14 : vector<8x8xi32>
    %16 = arith.extui %15 : vector<8x8xi1> to vector<8x8xi32>
    %17 = arith.sitofp %16 : vector<8x8xi32> to vector<8x8xf32>
    %cst = arith.constant dense<0.000000e+00> : vector<8x128xf32>
    %18 = tpu.matmul %17, %3, %cst {dimension_numbers = #tpu.dot_dimension_numbers<[1], [0], [0], [1], [0, 0, 1, 1], [], []>} : vector<8x8xf32>, vector<8x128xf32>, vector<8x128xf32> -> vector<8x128xf32>
    %19 = arith.addf %18, %11 : vector<8x128xf32>
    %cst_17 = arith.constant dense<0.000000e+00> : vector<8x512xf32>
    %20 = tpu.matmul %19, %4, %cst_17 {dimension_numbers = #tpu.dot_dimension_numbers<[1], [0], [0], [1], [0, 0, 1, 1], [], []>} : vector<8x128xf32>, vector<128x512xf32>, vector<8x512xf32> -> vector<8x512xf32>
    %21 = vector.broadcast %5 : vector<1x512xf32> to vector<8x512xf32>
    %22 = arith.addf %20, %21 : vector<8x512xf32>
    %23 = vector.extract_strided_slice %22 {offsets = [0, 0], sizes = [8, 128], strides = [1, 1]} : vector<8x512xf32> to vector<8x128xf32>
    %24 = arith.negf %23 : vector<8x128xf32>
    %25 = math.exp %24 : vector<8x128xf32>
    %cst_18 = arith.constant 1.000000e+00 : f32
    %26 = vector.broadcast %cst_18 : f32 to vector<8x128xf32>
    %27 = arith.addf %26, %25 : vector<8x128xf32>
    %28 = arith.divf %26, %27 : vector<8x128xf32>
    %29 = vector.extract_strided_slice %22 {offsets = [0, 128], sizes = [8, 128], strides = [1, 1]} : vector<8x512xf32> to vector<8x128xf32>
    %30 = arith.negf %29 : vector<8x128xf32>
    %31 = math.exp %30 : vector<8x128xf32>
    %cst_19 = arith.constant 1.000000e+00 : f32
    %32 = vector.broadcast %cst_19 : f32 to vector<8x128xf32>
    %33 = arith.addf %32, %31 : vector<8x128xf32>
    %34 = arith.divf %32, %33 : vector<8x128xf32>
    %35 = vector.extract_strided_slice %22 {offsets = [0, 256], sizes = [8, 128], strides = [1, 1]} : vector<8x512xf32> to vector<8x128xf32>
    %36 = math.tanh %35 : vector<8x128xf32>
    %37 = vector.extract_strided_slice %22 {offsets = [0, 384], sizes = [8, 128], strides = [1, 1]} : vector<8x512xf32> to vector<8x128xf32>
    %38 = arith.negf %37 : vector<8x128xf32>
    %39 = math.exp %38 : vector<8x128xf32>
    %cst_20 = arith.constant 1.000000e+00 : f32
    %40 = vector.broadcast %cst_20 : f32 to vector<8x128xf32>
    %41 = arith.addf %40, %39 : vector<8x128xf32>
    %42 = arith.divf %40, %41 : vector<8x128xf32>
    %43 = arith.mulf %34, %12 : vector<8x128xf32>
    %44 = arith.mulf %28, %36 : vector<8x128xf32>
    %45 = arith.addf %43, %44 : vector<8x128xf32>
    %46 = math.tanh %45 : vector<8x128xf32>
    %47 = arith.mulf %42, %46 : vector<8x128xf32>
    %cst_21 = arith.constant dense<0.000000e+00> : vector<8x128xf32>
    %48 = tpu.matmul %47, %6, %cst_21 {dimension_numbers = #tpu.dot_dimension_numbers<[1], [0], [0], [1], [0, 0, 1, 1], [], []>} : vector<8x128xf32>, vector<128x128xf32>, vector<8x128xf32> -> vector<8x128xf32>
    %49 = vector.broadcast %7 : vector<1x128xf32> to vector<8x128xf32>
    %50 = arith.addf %48, %49 : vector<8x128xf32>
    %cst_22 = arith.constant dense<0xFF800000> : vector<8xf32>
    %51 = vector.multi_reduction <maximumf>, %50, %cst_22 [1] : vector<8x128xf32> to vector<8xf32>
    %52 = vector.shape_cast %51 : vector<8xf32> to vector<8x1xf32>
    %53 = vector.broadcast %52 : vector<8x1xf32> to vector<8x128xf32>
    %54 = arith.subf %50, %53 : vector<8x128xf32>
    %55 = math.exp %54 : vector<8x128xf32>
    %cst_23 = arith.constant dense<0.000000e+00> : vector<8xf32>
    %56 = vector.multi_reduction <add>, %55, %cst_23 [1] : vector<8x128xf32> to vector<8xf32>
    %57 = vector.shape_cast %56 : vector<8xf32> to vector<8x1xf32>
    %58 = math.log %57 : vector<8x1xf32>
    %59 = vector.broadcast %58 : vector<8x1xf32> to vector<8x128xf32>
    %60 = arith.subf %54, %59 : vector<8x128xf32>
    %c0_24 = arith.constant 0 : index
    %c0_25 = arith.constant 0 : index
    %c0_26 = arith.constant 0 : index
    %61 = vector.load %arg10[%c0_24, %c0_25, %c0_26] : memref<8x8x128xf32, #tpu.memory_space<vmem>>, vector<1x8x128xf32>
    %62 = vector.shape_cast %61 : vector<1x8x128xf32> to vector<8x128xf32>
    %63 = vector.shape_cast %60 : vector<8x128xf32> to vector<1x8x128xf32>
    tpu.vector_store %arg10[%c0_24, %c0_25, %c0_26], %63 {strides = array<i32>} : memref<8x8x128xf32, #tpu.memory_space<vmem>>, vector<1x8x128xf32>,
    %64 = vector.extract_strided_slice %9 {offsets = [0, 1], sizes = [8, 1], strides = [1, 1]} : vector<8x8xi32> to vector<8x1xi32>
    %65 = vector.broadcast %64 : vector<8x1xi32> to vector<8x8xi32>
    %66 = arith.cmpi eq, %10, %65 : vector<8x8xi32>
    %67 = arith.extui %66 : vector<8x8xi1> to vector<8x8xi32>
    %68 = arith.sitofp %67 : vector<8x8xi32> to vector<8x8xf32>
    %cst_27 = arith.constant dense<0.000000e+00> : vector<8x128xf32>
    %69 = tpu.matmul %68, %3, %cst_27 {dimension_numbers = #tpu.dot_dimension_numbers<[1], [0], [0], [1], [0, 0, 1, 1], [], []>} : vector<8x8xf32>, vector<8x128xf32>, vector<8x128xf32> -> vector<8x128xf32>
    %70 = arith.addf %69, %47 : vector<8x128xf32>
    %cst_28 = arith.constant dense<0.000000e+00> : vector<8x512xf32>
    %71 = tpu.matmul %70, %4, %cst_28 {dimension_numbers = #tpu.dot_dimension_numbers<[1], [0], [0], [1], [0, 0, 1, 1], [], []>} : vector<8x128xf32>, vector<128x512xf32>, vector<8x512xf32> -> vector<8x512xf32>
    %72 = vector.broadcast %5 : vector<1x512xf32> to vector<8x512xf32>
    %73 = arith.addf %71, %72 : vector<8x512xf32>
    %74 = vector.extract_strided_slice %73 {offsets = [0, 0], sizes = [8, 128], strides = [1, 1]} : vector<8x512xf32> to vector<8x128xf32>
    %75 = arith.negf %74 : vector<8x128xf32>
    %76 = math.exp %75 : vector<8x128xf32>
    %cst_29 = arith.constant 1.000000e+00 : f32
    %77 = vector.broadcast %cst_29 : f32 to vector<8x128xf32>
    %78 = arith.addf %77, %76 : vector<8x128xf32>
    %79 = arith.divf %77, %78 : vector<8x128xf32>
    %80 = vector.extract_strided_slice %73 {offsets = [0, 128], sizes = [8, 128], strides = [1, 1]} : vector<8x512xf32> to vector<8x128xf32>
    %81 = arith.negf %80 : vector<8x128xf32>
    %82 = math.exp %81 : vector<8x128xf32>
    %cst_30 = arith.constant 1.000000e+00 : f32
    %83 = vector.broadcast %cst_30 : f32 to vector<8x128xf32>
    %84 = arith.addf %83, %82 : vector<8x128xf32>
    %85 = arith.divf %83, %84 : vector<8x128xf32>
    %86 = vector.extract_strided_slice %73 {offsets = [0, 256], sizes = [8, 128], strides = [1, 1]} : vector<8x512xf32> to vector<8x128xf32>
    %87 = math.tanh %86 : vector<8x128xf32>
    %88 = vector.extract_strided_slice %73 {offsets = [0, 384], sizes = [8, 128], strides = [1, 1]} : vector<8x512xf32> to vector<8x128xf32>
    %89 = arith.negf %88 : vector<8x128xf32>
    %90 = math.exp %89 : vector<8x128xf32>
    %cst_31 = arith.constant 1.000000e+00 : f32
    %91 = vector.broadcast %cst_31 : f32 to vector<8x128xf32>
    %92 = arith.addf %91, %90 : vector<8x128xf32>
    %93 = arith.divf %91, %92 : vector<8x128xf32>
    %94 = arith.mulf %85, %45 : vector<8x128xf32>
    %95 = arith.mulf %79, %87 : vector<8x128xf32>
    %96 = arith.addf %94, %95 : vector<8x128xf32>
    %97 = math.tanh %96 : vector<8x128xf32>
    %98 = arith.mulf %93, %97 : vector<8x128xf32>
    %cst_32 = arith.constant dense<0.000000e+00> : vector<8x128xf32>
    %99 = tpu.matmul %98, %6, %cst_32 {dimension_numbers = #tpu.dot_dimension_numbers<[1], [0], [0], [1], [0, 0, 1, 1], [], []>} : vector<8x128xf32>, vector<128x128xf32>, vector<8x128xf32> -> vector<8x128xf32>
    %100 = vector.broadcast %7 : vector<1x128xf32> to vector<8x128xf32>
    %101 = arith.addf %99, %100 : vector<8x128xf32>
    %cst_33 = arith.constant dense<0xFF800000> : vector<8xf32>
    %102 = vector.multi_reduction <maximumf>, %101, %cst_33 [1] : vector<8x128xf32> to vector<8xf32>
    %103 = vector.shape_cast %102 : vector<8xf32> to vector<8x1xf32>
    %104 = vector.broadcast %103 : vector<8x1xf32> to vector<8x128xf32>
    %105 = arith.subf %101, %104 : vector<8x128xf32>
    %106 = math.exp %105 : vector<8x128xf32>
    %cst_34 = arith.constant dense<0.000000e+00> : vector<8xf32>
    %107 = vector.multi_reduction <add>, %106, %cst_34 [1] : vector<8x128xf32> to vector<8xf32>
    %108 = vector.shape_cast %107 : vector<8xf32> to vector<8x1xf32>
    %109 = math.log %108 : vector<8x1xf32>
    %110 = vector.broadcast %109 : vector<8x1xf32> to vector<8x128xf32>
    %111 = arith.subf %105, %110 : vector<8x128xf32>
    %c1 = arith.constant 1 : index
    %c0_35 = arith.constant 0 : index
    %c0_36 = arith.constant 0 : index
    %112 = vector.load %arg10[%c1, %c0_35, %c0_36] : memref<8x8x128xf32, #tpu.memory_space<vmem>>, vector<1x8x128xf32>
    %113 = vector.shape_cast %112 : vector<1x8x128xf32> to vector<8x128xf32>
    %114 = vector.shape_cast %111 : vector<8x128xf32> to vector<1x8x128xf32>
    tpu.vector_store %arg10[%c1, %c0_35, %c0_36], %114 {strides = array<i32>} : memref<8x8x128xf32, #tpu.memory_space<vmem>>, vector<1x8x128xf32>,
    %115 = vector.extract_strided_slice %9 {offsets = [0, 2], sizes = [8, 1], strides = [1, 1]} : vector<8x8xi32> to vector<8x1xi32>
    %116 = vector.broadcast %115 : vector<8x1xi32> to vector<8x8xi32>
    %117 = arith.cmpi eq, %10, %116 : vector<8x8xi32>
    %118 = arith.extui %117 : vector<8x8xi1> to vector<8x8xi32>
    %119 = arith.sitofp %118 : vector<8x8xi32> to vector<8x8xf32>
    %cst_37 = arith.constant dense<0.000000e+00> : vector<8x128xf32>
    %120 = tpu.matmul %119, %3, %cst_37 {dimension_numbers = #tpu.dot_dimension_numbers<[1], [0], [0], [1], [0, 0, 1, 1], [], []>} : vector<8x8xf32>, vector<8x128xf32>, vector<8x128xf32> -> vector<8x128xf32>
    %121 = arith.addf %120, %98 : vector<8x128xf32>
    %cst_38 = arith.constant dense<0.000000e+00> : vector<8x512xf32>
    %122 = tpu.matmul %121, %4, %cst_38 {dimension_numbers = #tpu.dot_dimension_numbers<[1], [0], [0], [1], [0, 0, 1, 1], [], []>} : vector<8x128xf32>, vector<128x512xf32>, vector<8x512xf32> -> vector<8x512xf32>
    %123 = vector.broadcast %5 : vector<1x512xf32> to vector<8x512xf32>
    %124 = arith.addf %122, %123 : vector<8x512xf32>
    %125 = vector.extract_strided_slice %124 {offsets = [0, 0], sizes = [8, 128], strides = [1, 1]} : vector<8x512xf32> to vector<8x128xf32>
    %126 = arith.negf %125 : vector<8x128xf32>
    %127 = math.exp %126 : vector<8x128xf32>
    %cst_39 = arith.constant 1.000000e+00 : f32
    %128 = vector.broadcast %cst_39 : f32 to vector<8x128xf32>
    %129 = arith.addf %128, %127 : vector<8x128xf32>
    %130 = arith.divf %128, %129 : vector<8x128xf32>
    %131 = vector.extract_strided_slice %124 {offsets = [0, 128], sizes = [8, 128], strides = [1, 1]} : vector<8x512xf32> to vector<8x128xf32>
    %132 = arith.negf %131 : vector<8x128xf32>
    %133 = math.exp %132 : vector<8x128xf32>
    %cst_40 = arith.constant 1.000000e+00 : f32
    %134 = vector.broadcast %cst_40 : f32 to vector<8x128xf32>
    %135 = arith.addf %134, %133 : vector<8x128xf32>
    %136 = arith.divf %134, %135 : vector<8x128xf32>
    %137 = vector.extract_strided_slice %124 {offsets = [0, 256], sizes = [8, 128], strides = [1, 1]} : vector<8x512xf32> to vector<8x128xf32>
    %138 = math.tanh %137 : vector<8x128xf32>
    %139 = vector.extract_strided_slice %124 {offsets = [0, 384], sizes = [8, 128], strides = [1, 1]} : vector<8x512xf32> to vector<8x128xf32>
    %140 = arith.negf %139 : vector<8x128xf32>
    %141 = math.exp %140 : vector<8x128xf32>
    %cst_41 = arith.constant 1.000000e+00 : f32
    %142 = vector.broadcast %cst_41 : f32 to vector<8x128xf32>
    %143 = arith.addf %142, %141 : vector<8x128xf32>
    %144 = arith.divf %142, %143 : vector<8x128xf32>
    %145 = arith.mulf %136, %96 : vector<8x128xf32>
    %146 = arith.mulf %130, %138 : vector<8x128xf32>
    %147 = arith.addf %145, %146 : vector<8x128xf32>
    %148 = math.tanh %147 : vector<8x128xf32>
    %149 = arith.mulf %144, %148 : vector<8x128xf32>
    %cst_42 = arith.constant dense<0.000000e+00> : vector<8x128xf32>
    %150 = tpu.matmul %149, %6, %cst_42 {dimension_numbers = #tpu.dot_dimension_numbers<[1], [0], [0], [1], [0, 0, 1, 1], [], []>} : vector<8x128xf32>, vector<128x128xf32>, vector<8x128xf32> -> vector<8x128xf32>
    %151 = vector.broadcast %7 : vector<1x128xf32> to vector<8x128xf32>
    %152 = arith.addf %150, %151 : vector<8x128xf32>
    %cst_43 = arith.constant dense<0xFF800000> : vector<8xf32>
    %153 = vector.multi_reduction <maximumf>, %152, %cst_43 [1] : vector<8x128xf32> to vector<8xf32>
    %154 = vector.shape_cast %153 : vector<8xf32> to vector<8x1xf32>
    %155 = vector.broadcast %154 : vector<8x1xf32> to vector<8x128xf32>
    %156 = arith.subf %152, %155 : vector<8x128xf32>
    %157 = math.exp %156 : vector<8x128xf32>
    %cst_44 = arith.constant dense<0.000000e+00> : vector<8xf32>
    %158 = vector.multi_reduction <add>, %157, %cst_44 [1] : vector<8x128xf32> to vector<8xf32>
    %159 = vector.shape_cast %158 : vector<8xf32> to vector<8x1xf32>
    %160 = math.log %159 : vector<8x1xf32>
    %161 = vector.broadcast %160 : vector<8x1xf32> to vector<8x128xf32>
    %162 = arith.subf %156, %161 : vector<8x128xf32>
    %c2 = arith.constant 2 : index
    %c0_45 = arith.constant 0 : index
    %c0_46 = arith.constant 0 : index
    %163 = vector.load %arg10[%c2, %c0_45, %c0_46] : memref<8x8x128xf32, #tpu.memory_space<vmem>>, vector<1x8x128xf32>
    %164 = vector.shape_cast %163 : vector<1x8x128xf32> to vector<8x128xf32>
    %165 = vector.shape_cast %162 : vector<8x128xf32> to vector<1x8x128xf32>
    tpu.vector_store %arg10[%c2, %c0_45, %c0_46], %165 {strides = array<i32>} : memref<8x8x128xf32, #tpu.memory_space<vmem>>, vector<1x8x128xf32>,
    %166 = vector.extract_strided_slice %9 {offsets = [0, 3], sizes = [8, 1], strides = [1, 1]} : vector<8x8xi32> to vector<8x1xi32>
    %167 = vector.broadcast %166 : vector<8x1xi32> to vector<8x8xi32>
    %168 = arith.cmpi eq, %10, %167 : vector<8x8xi32>
    %169 = arith.extui %168 : vector<8x8xi1> to vector<8x8xi32>
    %170 = arith.sitofp %169 : vector<8x8xi32> to vector<8x8xf32>
    %cst_47 = arith.constant dense<0.000000e+00> : vector<8x128xf32>
    %171 = tpu.matmul %170, %3, %cst_47 {dimension_numbers = #tpu.dot_dimension_numbers<[1], [0], [0], [1], [0, 0, 1, 1], [], []>} : vector<8x8xf32>, vector<8x128xf32>, vector<8x128xf32> -> vector<8x128xf32>
    %172 = arith.addf %171, %149 : vector<8x128xf32>
    %cst_48 = arith.constant dense<0.000000e+00> : vector<8x512xf32>
    %173 = tpu.matmul %172, %4, %cst_48 {dimension_numbers = #tpu.dot_dimension_numbers<[1], [0], [0], [1], [0, 0, 1, 1], [], []>} : vector<8x128xf32>, vector<128x512xf32>, vector<8x512xf32> -> vector<8x512xf32>
    %174 = vector.broadcast %5 : vector<1x512xf32> to vector<8x512xf32>
    %175 = arith.addf %173, %174 : vector<8x512xf32>
    %176 = vector.extract_strided_slice %175 {offsets = [0, 0], sizes = [8, 128], strides = [1, 1]} : vector<8x512xf32> to vector<8x128xf32>
    %177 = arith.negf %176 : vector<8x128xf32>
    %178 = math.exp %177 : vector<8x128xf32>
    %cst_49 = arith.constant 1.000000e+00 : f32
    %179 = vector.broadcast %cst_49 : f32 to vector<8x128xf32>
    %180 = arith.addf %179, %178 : vector<8x128xf32>
    %181 = arith.divf %179, %180 : vector<8x128xf32>
    %182 = vector.extract_strided_slice %175 {offsets = [0, 128], sizes = [8, 128], strides = [1, 1]} : vector<8x512xf32> to vector<8x128xf32>
    %183 = arith.negf %182 : vector<8x128xf32>
    %184 = math.exp %183 : vector<8x128xf32>
    %cst_50 = arith.constant 1.000000e+00 : f32
    %185 = vector.broadcast %cst_50 : f32 to vector<8x128xf32>
    %186 = arith.addf %185, %184 : vector<8x128xf32>
    %187 = arith.divf %185, %186 : vector<8x128xf32>
    %188 = vector.extract_strided_slice %175 {offsets = [0, 256], sizes = [8, 128], strides = [1, 1]} : vector<8x512xf32> to vector<8x128xf32>
    %189 = math.tanh %188 : vector<8x128xf32>
    %190 = vector.extract_strided_slice %175 {offsets = [0, 384], sizes = [8, 128], strides = [1, 1]} : vector<8x512xf32> to vector<8x128xf32>
    %191 = arith.negf %190 : vector<8x128xf32>
    %192 = math.exp %191 : vector<8x128xf32>
    %cst_51 = arith.constant 1.000000e+00 : f32
    %193 = vector.broadcast %cst_51 : f32 to vector<8x128xf32>
    %194 = arith.addf %193, %192 : vector<8x128xf32>
    %195 = arith.divf %193, %194 : vector<8x128xf32>
    %196 = arith.mulf %187, %147 : vector<8x128xf32>
    %197 = arith.mulf %181, %189 : vector<8x128xf32>
    %198 = arith.addf %196, %197 : vector<8x128xf32>
    %199 = math.tanh %198 : vector<8x128xf32>
    %200 = arith.mulf %195, %199 : vector<8x128xf32>
    %cst_52 = arith.constant dense<0.000000e+00> : vector<8x128xf32>
    %201 = tpu.matmul %200, %6, %cst_52 {dimension_numbers = #tpu.dot_dimension_numbers<[1], [0], [0], [1], [0, 0, 1, 1], [], []>} : vector<8x128xf32>, vector<128x128xf32>, vector<8x128xf32> -> vector<8x128xf32>
    %202 = vector.broadcast %7 : vector<1x128xf32> to vector<8x128xf32>
    %203 = arith.addf %201, %202 : vector<8x128xf32>
    %cst_53 = arith.constant dense<0xFF800000> : vector<8xf32>
    %204 = vector.multi_reduction <maximumf>, %203, %cst_53 [1] : vector<8x128xf32> to vector<8xf32>
    %205 = vector.shape_cast %204 : vector<8xf32> to vector<8x1xf32>
    %206 = vector.broadcast %205 : vector<8x1xf32> to vector<8x128xf32>
    %207 = arith.subf %203, %206 : vector<8x128xf32>
    %208 = math.exp %207 : vector<8x128xf32>
    %cst_54 = arith.constant dense<0.000000e+00> : vector<8xf32>
    %209 = vector.multi_reduction <add>, %208, %cst_54 [1] : vector<8x128xf32> to vector<8xf32>
    %210 = vector.shape_cast %209 : vector<8xf32> to vector<8x1xf32>
    %211 = math.log %210 : vector<8x1xf32>
    %212 = vector.broadcast %211 : vector<8x1xf32> to vector<8x128xf32>
    %213 = arith.subf %207, %212 : vector<8x128xf32>
    %c3 = arith.constant 3 : index
    %c0_55 = arith.constant 0 : index
    %c0_56 = arith.constant 0 : index
    %214 = vector.load %arg10[%c3, %c0_55, %c0_56] : memref<8x8x128xf32, #tpu.memory_space<vmem>>, vector<1x8x128xf32>
    %215 = vector.shape_cast %214 : vector<1x8x128xf32> to vector<8x128xf32>
    %216 = vector.shape_cast %213 : vector<8x128xf32> to vector<1x8x128xf32>
    tpu.vector_store %arg10[%c3, %c0_55, %c0_56], %216 {strides = array<i32>} : memref<8x8x128xf32, #tpu.memory_space<vmem>>, vector<1x8x128xf32>,
    %217 = vector.extract_strided_slice %9 {offsets = [0, 4], sizes = [8, 1], strides = [1, 1]} : vector<8x8xi32> to vector<8x1xi32>
    %218 = vector.broadcast %217 : vector<8x1xi32> to vector<8x8xi32>
    %219 = arith.cmpi eq, %10, %218 : vector<8x8xi32>
    %220 = arith.extui %219 : vector<8x8xi1> to vector<8x8xi32>
    %221 = arith.sitofp %220 : vector<8x8xi32> to vector<8x8xf32>
    %cst_57 = arith.constant dense<0.000000e+00> : vector<8x128xf32>
    %222 = tpu.matmul %221, %3, %cst_57 {dimension_numbers = #tpu.dot_dimension_numbers<[1], [0], [0], [1], [0, 0, 1, 1], [], []>} : vector<8x8xf32>, vector<8x128xf32>, vector<8x128xf32> -> vector<8x128xf32>
    %223 = arith.addf %222, %200 : vector<8x128xf32>
    %cst_58 = arith.constant dense<0.000000e+00> : vector<8x512xf32>
    %224 = tpu.matmul %223, %4, %cst_58 {dimension_numbers = #tpu.dot_dimension_numbers<[1], [0], [0], [1], [0, 0, 1, 1], [], []>} : vector<8x128xf32>, vector<128x512xf32>, vector<8x512xf32> -> vector<8x512xf32>
    %225 = vector.broadcast %5 : vector<1x512xf32> to vector<8x512xf32>
    %226 = arith.addf %224, %225 : vector<8x512xf32>
    %227 = vector.extract_strided_slice %226 {offsets = [0, 0], sizes = [8, 128], strides = [1, 1]} : vector<8x512xf32> to vector<8x128xf32>
    %228 = arith.negf %227 : vector<8x128xf32>
    %229 = math.exp %228 : vector<8x128xf32>
    %cst_59 = arith.constant 1.000000e+00 : f32
    %230 = vector.broadcast %cst_59 : f32 to vector<8x128xf32>
    %231 = arith.addf %230, %229 : vector<8x128xf32>
    %232 = arith.divf %230, %231 : vector<8x128xf32>
    %233 = vector.extract_strided_slice %226 {offsets = [0, 128], sizes = [8, 128], strides = [1, 1]} : vector<8x512xf32> to vector<8x128xf32>
    %234 = arith.negf %233 : vector<8x128xf32>
    %235 = math.exp %234 : vector<8x128xf32>
    %cst_60 = arith.constant 1.000000e+00 : f32
    %236 = vector.broadcast %cst_60 : f32 to vector<8x128xf32>
    %237 = arith.addf %236, %235 : vector<8x128xf32>
    %238 = arith.divf %236, %237 : vector<8x128xf32>
    %239 = vector.extract_strided_slice %226 {offsets = [0, 256], sizes = [8, 128], strides = [1, 1]} : vector<8x512xf32> to vector<8x128xf32>
    %240 = math.tanh %239 : vector<8x128xf32>
    %241 = vector.extract_strided_slice %226 {offsets = [0, 384], sizes = [8, 128], strides = [1, 1]} : vector<8x512xf32> to vector<8x128xf32>
    %242 = arith.negf %241 : vector<8x128xf32>
    %243 = math.exp %242 : vector<8x128xf32>
    %cst_61 = arith.constant 1.000000e+00 : f32
    %244 = vector.broadcast %cst_61 : f32 to vector<8x128xf32>
    %245 = arith.addf %244, %243 : vector<8x128xf32>
    %246 = arith.divf %244, %245 : vector<8x128xf32>
    %247 = arith.mulf %238, %198 : vector<8x128xf32>
    %248 = arith.mulf %232, %240 : vector<8x128xf32>
    %249 = arith.addf %247, %248 : vector<8x128xf32>
    %250 = math.tanh %249 : vector<8x128xf32>
    %251 = arith.mulf %246, %250 : vector<8x128xf32>
    %cst_62 = arith.constant dense<0.000000e+00> : vector<8x128xf32>
    %252 = tpu.matmul %251, %6, %cst_62 {dimension_numbers = #tpu.dot_dimension_numbers<[1], [0], [0], [1], [0, 0, 1, 1], [], []>} : vector<8x128xf32>, vector<128x128xf32>, vector<8x128xf32> -> vector<8x128xf32>
    %253 = vector.broadcast %7 : vector<1x128xf32> to vector<8x128xf32>
    %254 = arith.addf %252, %253 : vector<8x128xf32>
    %cst_63 = arith.constant dense<0xFF800000> : vector<8xf32>
    %255 = vector.multi_reduction <maximumf>, %254, %cst_63 [1] : vector<8x128xf32> to vector<8xf32>
    %256 = vector.shape_cast %255 : vector<8xf32> to vector<8x1xf32>
    %257 = vector.broadcast %256 : vector<8x1xf32> to vector<8x128xf32>
    %258 = arith.subf %254, %257 : vector<8x128xf32>
    %259 = math.exp %258 : vector<8x128xf32>
    %cst_64 = arith.constant dense<0.000000e+00> : vector<8xf32>
    %260 = vector.multi_reduction <add>, %259, %cst_64 [1] : vector<8x128xf32> to vector<8xf32>
    %261 = vector.shape_cast %260 : vector<8xf32> to vector<8x1xf32>
    %262 = math.log %261 : vector<8x1xf32>
    %263 = vector.broadcast %262 : vector<8x1xf32> to vector<8x128xf32>
    %264 = arith.subf %258, %263 : vector<8x128xf32>
    %c4 = arith.constant 4 : index
    %c0_65 = arith.constant 0 : index
    %c0_66 = arith.constant 0 : index
    %265 = vector.load %arg10[%c4, %c0_65, %c0_66] : memref<8x8x128xf32, #tpu.memory_space<vmem>>, vector<1x8x128xf32>
    %266 = vector.shape_cast %265 : vector<1x8x128xf32> to vector<8x128xf32>
    %267 = vector.shape_cast %264 : vector<8x128xf32> to vector<1x8x128xf32>
    tpu.vector_store %arg10[%c4, %c0_65, %c0_66], %267 {strides = array<i32>} : memref<8x8x128xf32, #tpu.memory_space<vmem>>, vector<1x8x128xf32>,
    %c0_67 = arith.constant 0 : index
    %c0_68 = arith.constant 0 : index
    %268 = vector.load %arg13[%c0_67, %c0_68] : memref<8x128xf32, #tpu.memory_space<vmem>>, vector<8x128xf32>
    tpu.vector_store %arg13[%c0_67, %c0_68], %251 {strides = array<i32>} : memref<8x128xf32, #tpu.memory_space<vmem>>, vector<8x128xf32>,
    %c0_69 = arith.constant 0 : index
    %c0_70 = arith.constant 0 : index
    %269 = vector.load %arg14[%c0_69, %c0_70] : memref<8x128xf32, #tpu.memory_space<vmem>>, vector<8x128xf32>
    tpu.vector_store %arg14[%c0_69, %c0_70], %249 {strides = array<i32>} : memref<8x128xf32, #tpu.memory_space<vmem>>, vector<8x128xf32>,
    %c0_i32_71 = arith.constant 0 : i32
    %270 = arith.cmpi eq, %arg1, %c0_i32_71 : i32
    %271 = arith.extui %270 : i1 to i32
    %c0_i32_72 = arith.constant 0 : i32
    %272 = arith.cmpi ne, %271, %c0_i32_72 : i32
    scf.if %272 {
      %c0_73 = arith.constant 0 : index
      %c0_74 = arith.constant 0 : index
      %273 = vector.load %arg11[%c0_73, %c0_74] : memref<8x128xf32, #tpu.memory_space<vmem>>, vector<8x128xf32>
      tpu.vector_store %arg11[%c0_73, %c0_74], %251 {strides = array<i32>} : memref<8x128xf32, #tpu.memory_space<vmem>>, vector<8x128xf32>,
      %c0_75 = arith.constant 0 : index
      %c0_76 = arith.constant 0 : index
      %274 = vector.load %arg12[%c0_75, %c0_76] : memref<8x128xf32, #tpu.memory_space<vmem>>, vector<8x128xf32>
      tpu.vector_store %arg12[%c0_75, %c0_76], %249 {strides = array<i32>} : memref<8x128xf32, #tpu.memory_space<vmem>>, vector<8x128xf32>,
    } else {
    }
    return
  }
  func.func @transform_0(%arg0: i32, %arg1: i32) -> (i32, i32, i32) {
    %c0_i32 = arith.constant 0 : i32
    %c0_i32_0 = arith.constant 0 : i32
    return %arg1, %arg0, %c0_i32 : i32, i32, i32
  }
  func.func @transform_1(%arg0: i32, %arg1: i32) -> (i32, i32) {
    %c0_i32 = arith.constant 0 : i32
    %c0_i32_0 = arith.constant 0 : i32
    return %arg0, %c0_i32 : i32, i32
  }
  func.func @transform_2(%arg0: i32, %arg1: i32) -> (i32, i32) {
    %c0_i32 = arith.constant 0 : i32
    %c0_i32_0 = arith.constant 0 : i32
    return %arg0, %c0_i32 : i32, i32
  }
  func.func @transform_3(%arg0: i32, %arg1: i32) -> (i32, i32) {
    %c0_i32 = arith.constant 0 : i32
    %c0_i32_0 = arith.constant 0 : i32
    %c0_i32_1 = arith.constant 0 : i32
    return %c0_i32, %c0_i32_0 : i32, i32
  }
  func.func @transform_4(%arg0: i32, %arg1: i32) -> (i32, i32) {
    %c0_i32 = arith.constant 0 : i32
    %c0_i32_0 = arith.constant 0 : i32
    %c0_i32_1 = arith.constant 0 : i32
    return %c0_i32, %c0_i32_0 : i32, i32
  }
  func.func @transform_5(%arg0: i32, %arg1: i32) -> (i32, i32) {
    %c0_i32 = arith.constant 0 : i32
    %c0_i32_0 = arith.constant 0 : i32
    %c0_i32_1 = arith.constant 0 : i32
    return %c0_i32, %c0_i32_0 : i32, i32
  }
  func.func @transform_6(%arg0: i32, %arg1: i32) -> (i32, i32) {
    %c0_i32 = arith.constant 0 : i32
    %c0_i32_0 = arith.constant 0 : i32
    %c0_i32_1 = arith.constant 0 : i32
    return %c0_i32, %c0_i32_0 : i32, i32
  }
  func.func @transform_7(%arg0: i32, %arg1: i32) -> (i32, i32) {
    %c0_i32 = arith.constant 0 : i32
    %c0_i32_0 = arith.constant 0 : i32
    %c0_i32_1 = arith.constant 0 : i32
    return %c0_i32, %c0_i32_0 : i32, i32
  }
  func.func @transform_8(%arg0: i32, %arg1: i32) -> (i32, i32, i32) {
    %c0_i32 = arith.constant 0 : i32
    %c0_i32_0 = arith.constant 0 : i32
    return %arg1, %arg0, %c0_i32 : i32, i32, i32
  }
  func.func @transform_9(%arg0: i32, %arg1: i32) -> (i32, i32) {
    %c0_i32 = arith.constant 0 : i32
    %c0_i32_0 = arith.constant 0 : i32
    return %arg0, %c0_i32 : i32, i32
  }
  func.func @transform_10(%arg0: i32, %arg1: i32) -> (i32, i32) {
    %c0_i32 = arith.constant 0 : i32
    %c0_i32_0 = arith.constant 0 : i32
    return %arg0, %c0_i32 : i32, i32
  }
}

</mosaic_0001>

<llo_original>
// kernel: tpu_custom_call.1
$region0: #{tpu_custom_call.1}
  #allocation0 [shape = 'u32[]', space=smem, size = 0x4, offset = 0x4, fixed_abs, tag = 'smem constant byte address 0x4 - core index']
  #allocation1 [shape = 'u32[144,128]{1,0:T(1,128)}', space=vmem, size = 0x12000, scoped, tag = 'internal scratch']
  #allocation2 [shape = 'f32[8,128]{1,0:T(8,128)}', space=vmem, size = 0x1000, scoped, tag = 'scratch operand']
  #allocation3 [shape = 'f32[8,128]{1,0:T(8,128)}', space=vmem, size = 0x1000, scoped, tag = 'scratch operand']
  %s0 = inlined_call_operand.hbm [shape: s32[1,8,8], index: 0, kind: input, shape index: {}]
  %s1 = inlined_call_operand.hbm [shape: f32[8,128], index: 1, kind: input, shape index: {}]
  %s2 = inlined_call_operand.hbm [shape: f32[8,128], index: 2, kind: input, shape index: {}]
  %s3 = inlined_call_operand.hbm [shape: f32[8,128], index: 3, kind: input, shape index: {}]
  %s4 = inlined_call_operand.hbm [shape: f32[128,512], index: 4, kind: input, shape index: {}]
  %s5 = inlined_call_operand.vmem [shape: f32[1,512], index: 5, kind: input, shape index: {}]
  %s6 = inlined_call_operand.hbm [shape: f32[128,128], index: 6, kind: input, shape index: {}]
  %s7 = inlined_call_operand.vmem [shape: f32[1,128], index: 7, kind: input, shape index: {}]
  %s8 = inlined_call_operand.hbm [shape: f32[8,8,128], index: 8, kind: output, shape index: {0}]
  %s9 = inlined_call_operand.hbm [shape: f32[8,128], index: 9, kind: output, shape index: {1}]
  %s10 = inlined_call_operand.hbm [shape: f32[8,128], index: 10, kind: output, shape index: {2}]
  %11 = xla_tuple %s8, %s9, %s10
  %s12 = sld [smem:[#allocation0]]
  $region90: #{tpu_custom_call.1} parent=0
    _
  %s14 = ssub.s32 1, %s12
  %s15 = scalar_select 0, %s14, %s12
  $region1: #{tpu_custom_call.1} parent=0
    #allocation4 [shape = 'u8[4096]{0}', space=vmem, size = 0x1000, scoped, tag = 'input window, operand 0, single buffered']
    #allocation5 [shape = 's32[1]{0}', space=sflag, size = 0x4, scoped, tag = 'scoped memory for tpu_custom_call.1']
    #allocation6 [shape = 's32[1]{0}', space=sflag, size = 0x4, scoped, tag = 'scoped memory for tpu_custom_call.1']
    #allocation7 [shape = 'u8[4096]{0}', space=vmem, size = 0x1000, scoped, tag = 'input window, operand 1, single buffered']
    #allocation8 [shape = 's32[1]{0}', space=sflag, size = 0x4, scoped, tag = 'scoped memory for tpu_custom_call.1']
    #allocation9 [shape = 'u8[4096]{0}', space=vmem, size = 0x1000, scoped, tag = 'input window, operand 2, single buffered']
    #allocation10 [shape = 'u8[4096]{0}', space=vmem, size = 0x1000, scoped, tag = 'input window, operand 3, single buffered']
    #allocation11 [shape = 's32[1]{0}', space=sflag, size = 0x4, scoped, tag = 'scoped memory for tpu_custom_call.1']
    #allocation12 [shape = 'u8[262144]{0}', space=vmem, size = 0x40000, scoped, tag = 'input window, operand 4, single buffered']
    #allocation13 [shape = 'u8[65536]{0}', space=vmem, size = 0x10000, scoped, tag = 'input window, operand 6, single buffered']
    #allocation14 [shape = 's32[1]{0}', space=sflag, size = 0x4, scoped, tag = 'scoped memory for tpu_custom_call.1']
    #allocation15 [shape = 'u8[32768]{0}', space=vmem, size = 0x8000, scoped, tag = 'output window, operand 0, single buffered']
    #allocation16 [shape = 'u8[4096]{0}', space=vmem, size = 0x1000, scoped, tag = 'output window, operand 1, single buffered']
    #allocation17 [shape = 's32[1]{0}', space=sflag, size = 0x4, scoped, tag = 'scoped memory for tpu_custom_call.1']
    #allocation18 [shape = 'u8[4096]{0}', space=vmem, size = 0x1000, scoped, tag = 'output window, operand 2, single buffered']
    %16 = vsyncpa [#allocation5], 0
    %17 = vsyncpa [#allocation8], 0
    %18 = vsyncpa [#allocation11], 0
    %19 = vsyncpa [#allocation14], 0
    %20 = vsyncpa [#allocation6], 0
    %21 = vsyncpa [#allocation17], 0
    // Predicated region
    $region2: #{tpu_custom_call.1} parent=1 // pred_check
      _
    $region3: #{tpu_custom_call.1} parent=1 // pred_check_branch
      %23 = sbr.rel (0) target = $region5
    $region4: #{tpu_custom_call.1} parent=1 // pred_region
      %s25 = ssub.s32 128, 128
      %26 = vsyncadd [#allocation5], %s25
      %s28 = sshll.u32 [#allocation4], 4
      %s29 = int_to_ptr.vmem [resolvable:$true] %s28
      %31 = dma.hbm_to_vmem [thread:$0]  %s0, 128, %s29, [#allocation5]
    $region5: #{tpu_custom_call.1} parent=1 // pred_fallthru
      _
    // Predicated region
    $region6: #{tpu_custom_call.1} parent=1 // pred_check
      _
    $region7: #{tpu_custom_call.1} parent=1 // pred_check_branch
      %33 = sbr.rel (0) target = $region9
    $region8: #{tpu_custom_call.1} parent=1 // pred_region
      %s35 = ssub.s32 128, 128
      %36 = vsyncadd [#allocation8], %s35
      %s38 = sshll.u32 [#allocation7], 4
      %s39 = int_to_ptr.vmem [resolvable:$true] %s38
      %41 = dma.hbm_to_vmem [thread:$0]  %s1, 128, %s39, [#allocation8]
    $region9: #{tpu_custom_call.1} parent=1 // pred_fallthru
      _
    // Predicated region
    $region10: #{tpu_custom_call.1} parent=1 // pred_check
      _
    $region11: #{tpu_custom_call.1} parent=1 // pred_check_branch
      %43 = sbr.rel (0) target = $region13
    $region12: #{tpu_custom_call.1} parent=1 // pred_region
      %s45 = ssub.s32 128, 128
      %46 = vsyncadd [#allocation8], %s45
      %s48 = sshll.u32 [#allocation9], 4
      %s49 = int_to_ptr.vmem [resolvable:$true] %s48
      %51 = dma.hbm_to_vmem [thread:$0]  %s2, 128, %s49, [#allocation8]
    $region13: #{tpu_custom_call.1} parent=1 // pred_fallthru
      _
    // Predicated region
    $region14: #{tpu_custom_call.1} parent=1 // pred_check
      _
    $region15: #{tpu_custom_call.1} parent=1 // pred_check_branch
      %53 = sbr.rel (0) target = $region17
    $region16: #{tpu_custom_call.1} parent=1 // pred_region
      %s55 = ssub.s32 128, 128
      %56 = vsyncadd [#allocation11], %s55
      %s58 = sshll.u32 [#allocation10], 4
      %s59 = int_to_ptr.vmem [resolvable:$true] %s58
      %61 = dma.hbm_to_vmem [thread:$0]  %s3, 128, %s59, [#allocation11]
    $region17: #{tpu_custom_call.1} parent=1 // pred_fallthru
      _
    // Predicated region
    $region18: #{tpu_custom_call.1} parent=1 // pred_check
      _
    $region19: #{tpu_custom_call.1} parent=1 // pred_check_branch
      %63 = sbr.rel (0) target = $region21
    $region20: #{tpu_custom_call.1} parent=1 // pred_region
      %s65 = ssub.s32 8192, 8192
      %66 = vsyncadd [#allocation11], %s65
      %s67 = sshll.u32 [#allocation12], 4
      %s68 = int_to_ptr.vmem [resolvable:$true] %s67
      %73 = dma.hbm_to_vmem [thread:$0]  %s4, 8192, %s68, [#allocation11], 512, 512, 32
    $region21: #{tpu_custom_call.1} parent=1 // pred_fallthru
      _
    // Predicated region
    $region22: #{tpu_custom_call.1} parent=1 // pred_check
      _
    $region23: #{tpu_custom_call.1} parent=1 // pred_check_branch
      %75 = sbr.rel (0) target = $region25
    $region24: #{tpu_custom_call.1} parent=1 // pred_region
      _
    $region25: #{tpu_custom_call.1} parent=1 // pred_fallthru
      _
    // Predicated region
    $region26: #{tpu_custom_call.1} parent=1 // pred_check
      _
    $region27: #{tpu_custom_call.1} parent=1 // pred_check_branch
      %77 = sbr.rel (0) target = $region29
    $region28: #{tpu_custom_call.1} parent=1 // pred_region
      %s79 = ssub.s32 2048, 2048
      %80 = vsyncadd [#allocation14], %s79
      %s81 = sshll.u32 [#allocation13], 4
      %s82 = int_to_ptr.vmem [resolvable:$true] %s81
      %87 = dma.hbm_to_vmem [thread:$0]  %s6, 2048, %s82, [#allocation14], 128, 128, 8
    $region29: #{tpu_custom_call.1} parent=1 // pred_fallthru
      _
    // Predicated region
    $region30: #{tpu_custom_call.1} parent=1 // pred_check
      _
    $region31: #{tpu_custom_call.1} parent=1 // pred_check_branch
      %89 = sbr.rel (0) target = $region33
    $region32: #{tpu_custom_call.1} parent=1 // pred_region
      _
    $region33: #{tpu_custom_call.1} parent=1 // pred_fallthru
      _
    // Predicated region
    $region34: #{tpu_custom_call.1} parent=1 // pred_check
      _
    $region35: #{tpu_custom_call.1} parent=1 // pred_check_branch
      %91 = sbr.rel (0) target = $region37
    $region36: #{tpu_custom_call.1} parent=1 // pred_region
      %92 = dma.done [#allocation5], 128
    $region37: #{tpu_custom_call.1} parent=1 // pred_fallthru
      _
    // Predicated region
    $region38: #{tpu_custom_call.1} parent=1 // pred_check
      _
    $region39: #{tpu_custom_call.1} parent=1 // pred_check_branch
      %94 = sbr.rel (0) target = $region41
    $region40: #{tpu_custom_call.1} parent=1 // pred_region
      %95 = dma.done [#allocation8], 128
    $region41: #{tpu_custom_call.1} parent=1 // pred_fallthru
      _
    // Predicated region
    $region42: #{tpu_custom_call.1} parent=1 // pred_check
      _
    $region43: #{tpu_custom_call.1} parent=1 // pred_check_branch
      %97 = sbr.rel (0) target = $region45
    $region44: #{tpu_custom_call.1} parent=1 // pred_region
      %98 = dma.done [#allocation8], 128
    $region45: #{tpu_custom_call.1} parent=1 // pred_fallthru
      _
    // Predicated region
    $region46: #{tpu_custom_call.1} parent=1 // pred_check
      _
    $region47: #{tpu_custom_call.1} parent=1 // pred_check_branch
      %100 = sbr.rel (0) target = $region49
    $region48: #{tpu_custom_call.1} parent=1 // pred_region
      %101 = dma.done [#allocation11], 128
    $region49: #{tpu_custom_call.1} parent=1 // pred_fallthru
      _
    // Predicated region
    $region50: #{tpu_custom_call.1} parent=1 // pred_check
      _
    $region51: #{tpu_custom_call.1} parent=1 // pred_check_branch
      %103 = sbr.rel (0) target = $region53
    $region52: #{tpu_custom_call.1} parent=1 // pred_region
      %104 = dma.done [#allocation11], 8192
    $region53: #{tpu_custom_call.1} parent=1 // pred_fallthru
      _
    // Predicated region
    $region54: #{tpu_custom_call.1} parent=1 // pred_check
      _
    $region55: #{tpu_custom_call.1} parent=1 // pred_check_branch
      %106 = sbr.rel (0) target = $region57
    $region56: #{tpu_custom_call.1} parent=1 // pred_region
      %107 = dma.done [#allocation14], 2048
    $region57: #{tpu_custom_call.1} parent=1 // pred_fallthru
      _
    %p108 = scmp.eq.s32.totalorder 0, 0
    // Predicated region
    $region58: #{tpu_custom_call.1} parent=1 // pred_check
      %p109 = pneg %p108
    $region59: #{tpu_custom_call.1} parent=1 // pred_check_branch
      %111 = sbr.rel (%p109) target = $region61
    $region60: #{tpu_custom_call.1} parent=1 // pred_region
      %v112 = vld [vmem:[#allocation7] sm:$0xff]
      %113 = vst [vmem:[#allocation2] sm:$0xff] %v112
      %v114 = vld [vmem:[#allocation9] sm:$0xff]
      %115 = vst [vmem:[#allocation3] sm:$0xff] %v114
    $region61: #{tpu_custom_call.1} parent=1 // pred_fallthru
      _
    %v116 = vld [vmem:[#allocation10] sm:$0xff]
    %v117 = vld [vmem:[#allocation12] sm:$0xff]
    %v118 = vld [vmem:[#allocation12 + $0x8] sm:$0xff]
    %v119 = vld [vmem:[#allocation12 + $0x10] sm:$0xff]
    %v120 = vld [vmem:[#allocation12 + $0x18] sm:$0xff]
    %v121 = vld [vmem:[#allocation12 + $0x20] sm:$0xff]
    %v122 = vld [vmem:[#allocation12 + $0x28] sm:$0xff]
    %v123 = vld [vmem:[#allocation12 + $0x30] sm:$0xff]
    %v124 = vld [vmem:[#allocation12 + $0x38] sm:$0xff]
    %v125 = vld [vmem:[#allocation12 + $0x40] sm:$0xff]
    %v126 = vld [vmem:[#allocation12 + $0x48] sm:$0xff]
    %v127 = vld [vmem:[#allocation12 + $0x50] sm:$0xff]
    %v128 = vld [vmem:[#allocation12 + $0x58] sm:$0xff]
    %v129 = vld [vmem:[#allocation12 + $0x60] sm:$0xff]
    %v130 = vld [vmem:[#allocation12 + $0x68] sm:$0xff]
    %v131 = vld [vmem:[#allocation12 + $0x70] sm:$0xff]
    %v132 = vld [vmem:[#allocation12 + $0x78] sm:$0xff]
    %v133 = vld [vmem:[#allocation12 + $0x80] sm:$0xff]
    %v134 = vld [vmem:[#allocation12 + $0x88] sm:$0xff]
    %v135 = vld [vmem:[#allocation12 + $0x90] sm:$0xff]
    %v136 = vld [vmem:[#allocation12 + $0x98] sm:$0xff]
    %v137 = vld [vmem:[#allocation12 + $0xa0] sm:$0xff]
    %v138 = vld [vmem:[#allocation12 + $0xa8] sm:$0xff]
    %v139 = vld [vmem:[#allocation12 + $0xb0] sm:$0xff]
    %v140 = vld [vmem:[#allocation12 + $0xb8] sm:$0xff]
    %v141 = vld [vmem:[#allocation12 + $0xc0] sm:$0xff]
    %v142 = vld [vmem:[#allocation12 + $0xc8] sm:$0xff]
    %v143 = vld [vmem:[#allocation12 + $0xd0] sm:$0xff]
    %v144 = vld [vmem:[#allocation12 + $0xd8] sm:$0xff]
    %v145 = vld [vmem:[#allocation12 + $0xe0] sm:$0xff]
    %v146 = vld [vmem:[#allocation12 + $0xe8] sm:$0xff]
    %v147 = vld [vmem:[#allocation12 + $0xf0] sm:$0xff]
    %v148 = vld [vmem:[#allocation12 + $0xf8] sm:$0xff]
    %v149 = vld [vmem:[#allocation12 + $0x100] sm:$0xff]
    %v150 = vld [vmem:[#allocation12 + $0x108] sm:$0xff]
    %v151 = vld [vmem:[#allocation12 + $0x110] sm:$0xff]
    %v152 = vld [vmem:[#allocation12 + $0x118] sm:$0xff]
    %v153 = vld [vmem:[#allocation12 + $0x120] sm:$0xff]
    %v154 = vld [vmem:[#allocation12 + $0x128] sm:$0xff]
    %v155 = vld [vmem:[#allocation12 + $0x130] sm:$0xff]
    %v156 = vld [vmem:[#allocation12 + $0x138] sm:$0xff]
    %v157 = vld [vmem:[#allocation12 + $0x140] sm:$0xff]
    %v158 = vld [vmem:[#allocation12 + $0x148] sm:$0xff]
    %v159 = vld [vmem:[#allocation12 + $0x150] sm:$0xff]
    %v160 = vld [vmem:[#allocation12 + $0x158] sm:$0xff]
    %v161 = vld [vmem:[#allocation12 + $0x160] sm:$0xff]
    %v162 = vld [vmem:[#allocation12 + $0x168] sm:$0xff]
    %v163 = vld [vmem:[#allocation12 + $0x170] sm:$0xff]
    %v164 = vld [vmem:[#allocation12 + $0x178] sm:$0xff]
    %v165 = vld [vmem:[#allocation12 + $0x180] sm:$0xff]
    %v166 = vld [vmem:[#allocation12 + $0x188] sm:$0xff]
    %v167 = vld [vmem:[#allocation12 + $0x190] sm:$0xff]
    %v168 = vld [vmem:[#allocation12 + $0x198] sm:$0xff]
    %v169 = vld [vmem:[#allocation12 + $0x1a0] sm:$0xff]
    %v170 = vld [vmem:[#allocation12 + $0x1a8] sm:$0xff]
    %v171 = vld [vmem:[#allocation12 + $0x1b0] sm:$0xff]
    %v172 = vld [vmem:[#allocation12 + $0x1b8] sm:$0xff]
    %v173 = vld [vmem:[#allocation12 + $0x1c0] sm:$0xff]
    %v174 = vld [vmem:[#allocation12 + $0x1c8] sm:$0xff]
    %v175 = vld [vmem:[#allocation12 + $0x1d0] sm:$0xff]
    %v176 = vld [vmem:[#allocation12 + $0x1d8] sm:$0xff]
    %v177 = vld [vmem:[#allocation12 + $0x1e0] sm:$0xff]
    %v178 = vld [vmem:[#allocation12 + $0x1e8] sm:$0xff]
    %v179 = vld [vmem:[#allocation12 + $0x1f0] sm:$0xff]
    %v180 = vld [vmem:[#allocation12 + $0x1f8] sm:$0xff]
    %v181 = vld [vmem:[%s5] sm:$0xf]
    %v182 = vld [vmem:[#allocation13] sm:$0xff]
    %v183 = vld [vmem:[#allocation13 + $0x8] sm:$0xff]
    %v184 = vld [vmem:[#allocation13 + $0x10] sm:$0xff]
    %v185 = vld [vmem:[#allocation13 + $0x18] sm:$0xff]
    %v186 = vld [vmem:[#allocation13 + $0x20] sm:$0xff]
    %v187 = vld [vmem:[#allocation13 + $0x28] sm:$0xff]
    %v188 = vld [vmem:[#allocation13 + $0x30] sm:$0xff]
    %v189 = vld [vmem:[#allocation13 + $0x38] sm:$0xff]
    %v190 = vld [vmem:[#allocation13 + $0x40] sm:$0xff]
    %v191 = vld [vmem:[#allocation13 + $0x48] sm:$0xff]
    %v192 = vld [vmem:[#allocation13 + $0x50] sm:$0xff]
    %v193 = vld [vmem:[#allocation13 + $0x58] sm:$0xff]
    %v194 = vld [vmem:[#allocation13 + $0x60] sm:$0xff]
    %v195 = vld [vmem:[#allocation13 + $0x68] sm:$0xff]
    %v196 = vld [vmem:[#allocation13 + $0x70] sm:$0xff]
    %v197 = vld [vmem:[#allocation13 + $0x78] sm:$0xff]
    %v198 = vld [vmem:[%s7] sm:$0x1]
    %v199 = vld [vmem:[#allocation4] sm:$0xff]
    %v200 = vlaneseq
    %v201 = vand.u32 %v200, 127
    %v202 = vld [vmem:[#allocation2] sm:$0xff]
    %v203 = vld [vmem:[#allocation3] sm:$0xff]
    %204 = vset.pattern.permute.xlu0 0
    %205 = vperm.xlu0 %204, %v199
    %v206 = vpop.permute.xlu0 %205
    %vm207 = vcmp.eq.s32.totalorder %v201, %v206
    %v208 = vsel %vm207, 1, 0
    %v209 = vcvt.s32.f32 %v208
    %vm210 = vcmask 64512
    %v212 = vsel %vm210, %v209, 0
    %214 = vmatprep.subr.mxu0 0.0
    %215 = vmatpush1.msra.mxu0 0.0
    %216 = vmatprep.subr.mxu0 0.0
    %217 = vmatpush1.msra.mxu0 0.0
    %218 = vmatprep.subr.mxu0 0.0
    %219 = vmatpush1.msra.mxu0 0.0
    %220 = vmatprep.subr.mxu0 0.0
    %221 = vmatpush1.msra.mxu0 0.0
    %222 = vmatprep.subr.mxu0 0.0
    %223 = vmatpush1.msra.mxu0 0.0
    %224 = vmatprep.subr.mxu0 0.0
    %225 = vmatpush1.msra.mxu0 0.0
    %226 = vmatprep.subr.mxu0 0.0
    %227 = vmatpush1.msra.mxu0 0.0
    %228 = vmatprep.subr.mxu0 0.0
    %229 = vmatpush1.msra.mxu0 0.0
    %230 = vmatprep.subr.mxu0 0.0
    %231 = vmatpush1.msra.mxu0 0.0
    %232 = vmatprep.subr.mxu0 0.0
    %233 = vmatpush1.msra.mxu0 0.0
    %234 = vmatprep.subr.mxu0 0.0
    %235 = vmatpush1.msra.mxu0 0.0
    %236 = vmatprep.subr.mxu0 0.0
    %237 = vmatpush1.msra.mxu0 0.0
    %238 = vmatprep.subr.mxu0 0.0
    %239 = vmatpush1.msra.mxu0 0.0
    %240 = vmatprep.subr.mxu0 0.0
    %241 = vmatpush1.msra.mxu0 0.0
    %242 = vmatprep.subr.mxu0 0.0
    %243 = vmatpush1.msra.mxu0 0.0
    %244 = vmatprep.subr.mxu0 0.0
    %245 = vmatpush1.msra.mxu0 %v116
    %246 = vmatprep.subr.mxu0 0.0
    %247 = vmatpush2.msra.mxu0 0.0
    %248 = vmatprep.subr.mxu0 0.0
    %249 = vmatpush2.msra.mxu0 0.0
    %250 = vmatprep.subr.mxu0 0.0
    %251 = vmatpush2.msra.mxu0 0.0
    %252 = vmatprep.subr.mxu0 0.0
    %253 = vmatpush2.msra.mxu0 0.0
    %254 = vmatprep.subr.mxu0 0.0
    %255 = vmatpush2.msra.mxu0 0.0
    %256 = vmatprep.subr.mxu0 0.0
    %257 = vmatpush2.msra.mxu0 0.0
    %258 = vmatprep.subr.mxu0 0.0
    %259 = vmatpush2.msra.mxu0 0.0
    %260 = vmatprep.subr.mxu0 0.0
    %261 = vmatpush2.msra.mxu0 0.0
    %262 = vmatprep.subr.mxu0 0.0
    %263 = vmatpush2.msra.mxu0 0.0
    %264 = vmatprep.subr.mxu0 0.0
    %265 = vmatpush2.msra.mxu0 0.0
    %266 = vmatprep.subr.mxu0 0.0
    %267 = vmatpush2.msra.mxu0 0.0
    %268 = vmatprep.subr.mxu0 0.0
    %269 = vmatpush2.msra.mxu0 0.0
    %270 = vmatprep.subr.mxu0 0.0
    %271 = vmatpush2.msra.mxu0 0.0
    %272 = vmatprep.subr.mxu0 0.0
    %273 = vmatpush2.msra.mxu0 0.0
    %274 = vmatprep.subr.mxu0 0.0
    %275 = vmatpush2.msra.mxu0 0.0
    %276 = vmatprep.subr.mxu0 0.0
    %277 = vmatpush2.msra.mxu0 0.0
    %278 = vmatprep.mubr.f32.mxu0 0.0
    %279 = vmatmul.mubr.f32.gmra.mxu0 %v212
    %v280 = vpop.f32.mrf.mxu0
    %v281 = vadd.f32 %v202, %v280
    %v282 = vpop.f32.mrf.mxu0
    %283 = vdwg.mxu0
    %v285 = vlaneseq
    %v286 = vshrl.u32 %v285, 7
    %v287 = vsub.s32 0, %v286
    %v288 = vrot.slane %v181, %v287
    %v289 = vlaneseq
    %v290 = vshrl.u32 %v289, 7
    %v291 = vsub.s32 1, %v290
    %v292 = vrot.slane %v181, %v291
    %v293 = vlaneseq
    %v294 = vshrl.u32 %v293, 7
    %v295 = vsub.s32 2, %v294
    %v296 = vrot.slane %v181, %v295
    %v297 = vlaneseq
    %v298 = vshrl.u32 %v297, 7
    %v299 = vsub.s32 3, %v298
    %v300 = vrot.slane %v181, %v299
    %305 = vmatprep.subr.mxu0 %v178
    %306 = vmatpush1.msra.mxu0 %v177
    %307 = vmatprep.subr.mxu0 %v174
    %308 = vmatpush1.msra.mxu0 %v173
    %309 = vmatprep.subr.mxu0 %v170
    %310 = vmatpush1.msra.mxu0 %v169
    %311 = vmatprep.subr.mxu0 %v166
    %312 = vmatpush1.msra.mxu0 %v165
    %313 = vmatprep.subr.mxu0 %v162
    %314 = vmatpush1.msra.mxu0 %v161
    %315 = vmatprep.subr.mxu0 %v158
    %316 = vmatpush1.msra.mxu0 %v157
    %317 = vmatprep.subr.mxu0 %v154
    %318 = vmatpush1.msra.mxu0 %v153
    %319 = vmatprep.subr.mxu0 %v150
    %320 = vmatpush1.msra.mxu0 %v149
    %321 = vmatprep.subr.mxu0 %v146
    %322 = vmatpush1.msra.mxu0 %v145
    %323 = vmatprep.subr.mxu0 %v142
    %324 = vmatpush1.msra.mxu0 %v141
    %325 = vmatprep.subr.mxu0 %v138
    %326 = vmatpush1.msra.mxu0 %v137
    %327 = vmatprep.subr.mxu0 %v134
    %328 = vmatpush1.msra.mxu0 %v133
    %329 = vmatprep.subr.mxu0 %v130
    %330 = vmatpush1.msra.mxu0 %v129
    %331 = vmatprep.subr.mxu0 %v126
    %332 = vmatpush1.msra.mxu0 %v125
    %333 = vmatprep.subr.mxu0 %v122
    %334 = vmatpush1.msra.mxu0 %v121
    %335 = vmatprep.subr.mxu0 %v118
    %336 = vmatpush1.msra.mxu0 %v117
    %337 = vmatprep.subr.mxu0 0.0
    %338 = vmatpush2.msra.mxu0 0.0
    %339 = vmatprep.subr.mxu0 0.0
    %340 = vmatpush2.msra.mxu0 0.0
    %341 = vmatprep.subr.mxu0 0.0
    %342 = vmatpush2.msra.mxu0 0.0
    %343 = vmatprep.subr.mxu0 0.0
    %344 = vmatpush2.msra.mxu0 0.0
    %345 = vmatprep.subr.mxu0 0.0
    %346 = vmatpush2.msra.mxu0 0.0
    %347 = vmatprep.subr.mxu0 0.0
    %348 = vmatpush2.msra.mxu0 0.0
    %349 = vmatprep.subr.mxu0 0.0
    %350 = vmatpush2.msra.mxu0 0.0
    %351 = vmatprep.subr.mxu0 0.0
    %352 = vmatpush2.msra.mxu0 0.0
    %353 = vmatprep.subr.mxu0 0.0
    %354 = vmatpush2.msra.mxu0 0.0
    %355 = vmatprep.subr.mxu0 0.0
    %356 = vmatpush2.msra.mxu0 0.0
    %357 = vmatprep.subr.mxu0 0.0
    %358 = vmatpush2.msra.mxu0 0.0
    %359 = vmatprep.subr.mxu0 0.0
    %360 = vmatpush2.msra.mxu0 0.0
    %361 = vmatprep.subr.mxu0 0.0
    %362 = vmatpush2.msra.mxu0 0.0
    %363 = vmatprep.subr.mxu0 0.0
    %364 = vmatpush2.msra.mxu0 0.0
    %365 = vmatprep.subr.mxu0 0.0
    %366 = vmatpush2.msra.mxu0 0.0
    %367 = vmatprep.subr.mxu0 0.0
    %368 = vmatpush2.msra.mxu0 0.0
    %369 = vmatprep.mubr.f32.mxu0 0.0
    %370 = vmatmul.mubr.f32.gmra.mxu0 %v281
    %v371 = vpop.f32.mrf.mxu0
    %v372 = vadd.f32 %v288, %v371
    %v373 = vpop.f32.mrf.mxu0
    %v374 = vadd.f32 %v292, %v373
    %375 = vdwg.mxu0
    %376 = vmatprep.subr.mxu0 %v180
    %377 = vmatpush1.msra.mxu0 %v179
    %378 = vmatprep.subr.mxu0 %v176
    %379 = vmatpush1.msra.mxu0 %v175
    %380 = vmatprep.subr.mxu0 %v172
    %381 = vmatpush1.msra.mxu0 %v171
    %382 = vmatprep.subr.mxu0 %v168
    %383 = vmatpush1.msra.mxu0 %v167
    %384 = vmatprep.subr.mxu0 %v164
    %385 = vmatpush1.msra.mxu0 %v163
    %386 = vmatprep.subr.mxu0 %v160
    %387 = vmatpush1.msra.mxu0 %v159
    %388 = vmatprep.subr.mxu0 %v156
    %389 = vmatpush1.msra.mxu0 %v155
    %390 = vmatprep.subr.mxu0 %v152
    %391 = vmatpush1.msra.mxu0 %v151
    %392 = vmatprep.subr.mxu0 %v148
    %393 = vmatpush1.msra.mxu0 %v147
    %394 = vmatprep.subr.mxu0 %v144
    %395 = vmatpush1.msra.mxu0 %v143
    %396 = vmatprep.subr.mxu0 %v140
    %397 = vmatpush1.msra.mxu0 %v139
    %398 = vmatprep.subr.mxu0 %v136
    %399 = vmatpush1.msra.mxu0 %v135
    %400 = vmatprep.subr.mxu0 %v132
    %401 = vmatpush1.msra.mxu0 %v131
    %402 = vmatprep.subr.mxu0 %v128
    %403 = vmatpush1.msra.mxu0 %v127
    %404 = vmatprep.subr.mxu0 %v124
    %405 = vmatpush1.msra.mxu0 %v123
    %406 = vmatprep.subr.mxu0 %v120
    %407 = vmatpush1.msra.mxu0 %v119
    %408 = vmatprep.subr.mxu0 0.0
    %409 = vmatpush2.msra.mxu0 0.0
    %410 = vmatprep.subr.mxu0 0.0
    %411 = vmatpush2.msra.mxu0 0.0
    %412 = vmatprep.subr.mxu0 0.0
    %413 = vmatpush2.msra.mxu0 0.0
    %414 = vmatprep.subr.mxu0 0.0
    %415 = vmatpush2.msra.mxu0 0.0
    %416 = vmatprep.subr.mxu0 0.0
    %417 = vmatpush2.msra.mxu0 0.0
    %418 = vmatprep.subr.mxu0 0.0
    %419 = vmatpush2.msra.mxu0 0.0
    %420 = vmatprep.subr.mxu0 0.0
    %421 = vmatpush2.msra.mxu0 0.0
    %422 = vmatprep.subr.mxu0 0.0
    %423 = vmatpush2.msra.mxu0 0.0
    %424 = vmatprep.subr.mxu0 0.0
    %425 = vmatpush2.msra.mxu0 0.0
    %426 = vmatprep.subr.mxu0 0.0
    %427 = vmatpush2.msra.mxu0 0.0
    %428 = vmatprep.subr.mxu0 0.0
    %429 = vmatpush2.msra.mxu0 0.0
    %430 = vmatprep.subr.mxu0 0.0
    %431 = vmatpush2.msra.mxu0 0.0
    %432 = vmatprep.subr.mxu0 0.0
    %433 = vmatpush2.msra.mxu0 0.0
    %434 = vmatprep.subr.mxu0 0.0
    %435 = vmatpush2.msra.mxu0 0.0
    %436 = vmatprep.subr.mxu0 0.0
    %437 = vmatpush2.msra.mxu0 0.0
    %438 = vmatprep.subr.mxu0 0.0
    %439 = vmatpush2.msra.mxu0 0.0
    %440 = vmatprep.mubr.f32.mxu0 0.0
    %441 = vmatmul.mubr.f32.gmra.mxu0 %v281
    %v442 = vpop.f32.mrf.mxu0
    %v443 = vadd.f32 %v296, %v442
    %v444 = vpop.f32.mrf.mxu0
    %v445 = vadd.f32 %v300, %v444
    %446 = vdwg.mxu0
    %v447 = vxor.u32 %v372, 2147483648
    %v448 = vmul.f32 %v447, 1.442695
    %v449 = vpow.pop %v448
    %v450 = vadd.f32 %v449, 1.0
    %v451 = vrcp.pop %v450
    %v452 = vmul.f32 1.0, %v451
    %v453 = vxor.u32 %v374, 2147483648
    %v454 = vmul.f32 %v453, 1.442695
    %v455 = vpow.pop %v454
    %v456 = vadd.f32 %v455, 1.0
    %v457 = vrcp.pop %v456
    %v458 = vmul.f32 1.0, %v457
    %v459 = vtanh.pop %v443
    %v460 = vxor.u32 %v445, 2147483648
    %v461 = vmul.f32 %v460, 1.442695
    %v462 = vpow.pop %v461
    %v463 = vadd.f32 %v462, 1.0
    %v464 = vrcp.pop %v463
    %v465 = vmul.f32 1.0, %v464
    %v466 = vmul.f32 %v458, %v203
    %v467 = vmul.f32 %v452, %v459
    %v468 = vadd.f32 %v466, %v467
    %v469 = vtanh.pop %v468
    %v470 = vmul.f32 %v465, %v469
    %v472 = vlaneseq
    %v473 = vshrl.u32 %v472, 7
    %v474 = vsub.s32 0, %v473
    %v475 = vrot.slane %v198, %v474
    %477 = vmatprep.subr.mxu0 0.0
    %478 = vmatpush1.msra.mxu0 %v197
    %479 = vmatprep.subr.mxu0 0.0
    %480 = vmatpush1.msra.mxu0 %v196
    %481 = vmatprep.subr.mxu0 0.0
    %482 = vmatpush1.msra.mxu0 %v195
    %483 = vmatprep.subr.mxu0 0.0
    %484 = vmatpush1.msra.mxu0 %v194
    %485 = vmatprep.subr.mxu0 0.0
    %486 = vmatpush1.msra.mxu0 %v193
    %487 = vmatprep.subr.mxu0 0.0
    %488 = vmatpush1.msra.mxu0 %v192
    %489 = vmatprep.subr.mxu0 0.0
    %490 = vmatpush1.msra.mxu0 %v191
    %491 = vmatprep.subr.mxu0 0.0
    %492 = vmatpush1.msra.mxu0 %v190
    %493 = vmatprep.subr.mxu0 0.0
    %494 = vmatpush1.msra.mxu0 %v189
    %495 = vmatprep.subr.mxu0 0.0
    %496 = vmatpush1.msra.mxu0 %v188
    %497 = vmatprep.subr.mxu0 0.0
    %498 = vmatpush1.msra.mxu0 %v187
    %499 = vmatprep.subr.mxu0 0.0
    %500 = vmatpush1.msra.mxu0 %v186
    %501 = vmatprep.subr.mxu0 0.0
    %502 = vmatpush1.msra.mxu0 %v185
    %503 = vmatprep.subr.mxu0 0.0
    %504 = vmatpush1.msra.mxu0 %v184
    %505 = vmatprep.subr.mxu0 0.0
    %506 = vmatpush1.msra.mxu0 %v183
    %507 = vmatprep.subr.mxu0 0.0
    %508 = vmatpush1.msra.mxu0 %v182
    %509 = vmatprep.subr.mxu0 0.0
    %510 = vmatpush2.msra.mxu0 0.0
    %511 = vmatprep.subr.mxu0 0.0
    %512 = vmatpush2.msra.mxu0 0.0
    %513 = vmatprep.subr.mxu0 0.0
    %514 = vmatpush2.msra.mxu0 0.0
    %515 = vmatprep.subr.mxu0 0.0
    %516 = vmatpush2.msra.mxu0 0.0
    %517 = vmatprep.subr.mxu0 0.0
    %518 = vmatpush2.msra.mxu0 0.0
    %519 = vmatprep.subr.mxu0 0.0
    %520 = vmatpush2.msra.mxu0 0.0
    %521 = vmatprep.subr.mxu0 0.0
    %522 = vmatpush2.msra.mxu0 0.0
    %523 = vmatprep.subr.mxu0 0.0
    %524 = vmatpush2.msra.mxu0 0.0
    %525 = vmatprep.subr.mxu0 0.0
    %526 = vmatpush2.msra.mxu0 0.0
    %527 = vmatprep.subr.mxu0 0.0
    %528 = vmatpush2.msra.mxu0 0.0
    %529 = vmatprep.subr.mxu0 0.0
    %530 = vmatpush2.msra.mxu0 0.0
    %531 = vmatprep.subr.mxu0 0.0
    %532 = vmatpush2.msra.mxu0 0.0
    %533 = vmatprep.subr.mxu0 0.0
    %534 = vmatpush2.msra.mxu0 0.0
    %535 = vmatprep.subr.mxu0 0.0
    %536 = vmatpush2.msra.mxu0 0.0
    %537 = vmatprep.subr.mxu0 0.0
    %538 = vmatpush2.msra.mxu0 0.0
    %539 = vmatprep.subr.mxu0 0.0
    %540 = vmatpush2.msra.mxu0 0.0
    %541 = vmatprep.mubr.f32.mxu0 0.0
    %542 = vmatmul.mubr.f32.gmra.mxu0 %v470
    %v543 = vpop.f32.mrf.mxu0
    %v544 = vadd.f32 %v475, %v543
    %v545 = vpop.f32.mrf.mxu0
    %546 = vdwg.mxu0
    %547 = vmax.xlane.f32.xlu0 %v544
    %v548 = vpop.xlane.xlu0 %547
    %v549 = vsub.f32 %v544, %v548
    %v550 = vmul.f32 %v549, 1.442695
    %v551 = vpow.pop %v550
    %552 = vadd.xlane.f32.xlu0 %v551
    %v553 = vpop.xlane.xlu0 %552
    %v554 = vlog2.pop %v553
    %v555 = vmul.f32 %v554, 0.6931472
    %v556 = vsub.f32 %v549, %v555
    %557 = vst [vmem:[#allocation15] sm:$0xff] %v556
    %558 = vset.pattern.permute.xlu0 1
    %559 = vperm.xlu0 %558, %v199
    %v560 = vpop.permute.xlu0 %559
    %vm561 = vcmp.eq.s32.totalorder %v201, %v560
    %v562 = vsel %vm561, 1, 0
    %v563 = vcvt.s32.f32 %v562
    %v565 = vsel %vm210, %v563, 0
    %567 = vmatprep.subr.mxu0 0.0
    %568 = vmatpush1.msra.mxu0 0.0
    %569 = vmatprep.subr.mxu0 0.0
    %570 = vmatpush1.msra.mxu0 0.0
    %571 = vmatprep.subr.mxu0 0.0
    %572 = vmatpush1.msra.mxu0 0.0
    %573 = vmatprep.subr.mxu0 0.0
    %574 = vmatpush1.msra.mxu0 0.0
    %575 = vmatprep.subr.mxu0 0.0
    %576 = vmatpush1.msra.mxu0 0.0
    %577 = vmatprep.subr.mxu0 0.0
    %578 = vmatpush1.msra.mxu0 0.0
    %579 = vmatprep.subr.mxu0 0.0
    %580 = vmatpush1.msra.mxu0 0.0
    %581 = vmatprep.subr.mxu0 0.0
    %582 = vmatpush1.msra.mxu0 0.0
    %583 = vmatprep.subr.mxu0 0.0
    %584 = vmatpush1.msra.mxu0 0.0
    %585 = vmatprep.subr.mxu0 0.0
    %586 = vmatpush1.msra.mxu0 0.0
    %587 = vmatprep.subr.mxu0 0.0
    %588 = vmatpush1.msra.mxu0 0.0
    %589 = vmatprep.subr.mxu0 0.0
    %590 = vmatpush1.msra.mxu0 0.0
    %591 = vmatprep.subr.mxu0 0.0
    %592 = vmatpush1.msra.mxu0 0.0
    %593 = vmatprep.subr.mxu0 0.0
    %594 = vmatpush1.msra.mxu0 0.0
    %595 = vmatprep.subr.mxu0 0.0
    %596 = vmatpush1.msra.mxu0 0.0
    %597 = vmatprep.subr.mxu0 0.0
    %598 = vmatpush1.msra.mxu0 %v116
    %599 = vmatprep.subr.mxu0 0.0
    %600 = vmatpush2.msra.mxu0 0.0
    %601 = vmatprep.subr.mxu0 0.0
    %602 = vmatpush2.msra.mxu0 0.0
    %603 = vmatprep.subr.mxu0 0.0
    %604 = vmatpush2.msra.mxu0 0.0
    %605 = vmatprep.subr.mxu0 0.0
    %606 = vmatpush2.msra.mxu0 0.0
    %607 = vmatprep.subr.mxu0 0.0
    %608 = vmatpush2.msra.mxu0 0.0
    %609 = vmatprep.subr.mxu0 0.0
    %610 = vmatpush2.msra.mxu0 0.0
    %611 = vmatprep.subr.mxu0 0.0
    %612 = vmatpush2.msra.mxu0 0.0
    %613 = vmatprep.subr.mxu0 0.0
    %614 = vmatpush2.msra.mxu0 0.0
    %615 = vmatprep.subr.mxu0 0.0
    %616 = vmatpush2.msra.mxu0 0.0
    %617 = vmatprep.subr.mxu0 0.0
    %618 = vmatpush2.msra.mxu0 0.0
    %619 = vmatprep.subr.mxu0 0.0
    %620 = vmatpush2.msra.mxu0 0.0
    %621 = vmatprep.subr.mxu0 0.0
    %622 = vmatpush2.msra.mxu0 0.0
    %623 = vmatprep.subr.mxu0 0.0
    %624 = vmatpush2.msra.mxu0 0.0
    %625 = vmatprep.subr.mxu0 0.0
    %626 = vmatpush2.msra.mxu0 0.0
    %627 = vmatprep.subr.mxu0 0.0
    %628 = vmatpush2.msra.mxu0 0.0
    %629 = vmatprep.subr.mxu0 0.0
    %630 = vmatpush2.msra.mxu0 0.0
    %631 = vmatprep.mubr.f32.mxu0 0.0
    %632 = vmatmul.mubr.f32.gmra.mxu0 %v565
    %v633 = vpop.f32.mrf.mxu0
    %v634 = vadd.f32 %v470, %v633
    %v635 = vpop.f32.mrf.mxu0
    %636 = vdwg.mxu0
    %637 = vmatprep.subr.mxu0 %v178
    %638 = vmatpush1.msra.mxu0 %v177
    %639 = vmatprep.subr.mxu0 %v174
    %640 = vmatpush1.msra.mxu0 %v173
    %641 = vmatprep.subr.mxu0 %v170
    %642 = vmatpush1.msra.mxu0 %v169
    %643 = vmatprep.subr.mxu0 %v166
    %644 = vmatpush1.msra.mxu0 %v165
    %645 = vmatprep.subr.mxu0 %v162
    %646 = vmatpush1.msra.mxu0 %v161
    %647 = vmatprep.subr.mxu0 %v158
    %648 = vmatpush1.msra.mxu0 %v157
    %649 = vmatprep.subr.mxu0 %v154
    %650 = vmatpush1.msra.mxu0 %v153
    %651 = vmatprep.subr.mxu0 %v150
    %652 = vmatpush1.msra.mxu0 %v149
    %653 = vmatprep.subr.mxu0 %v146
    %654 = vmatpush1.msra.mxu0 %v145
    %655 = vmatprep.subr.mxu0 %v142
    %656 = vmatpush1.msra.mxu0 %v141
    %657 = vmatprep.subr.mxu0 %v138
    %658 = vmatpush1.msra.mxu0 %v137
    %659 = vmatprep.subr.mxu0 %v134
    %660 = vmatpush1.msra.mxu0 %v133
    %661 = vmatprep.subr.mxu0 %v130
    %662 = vmatpush1.msra.mxu0 %v129
    %663 = vmatprep.subr.mxu0 %v126
    %664 = vmatpush1.msra.mxu0 %v125
    %665 = vmatprep.subr.mxu0 %v122
    %666 = vmatpush1.msra.mxu0 %v121
    %667 = vmatprep.subr.mxu0 %v118
    %668 = vmatpush1.msra.mxu0 %v117
    %669 = vmatprep.subr.mxu0 0.0
    %670 = vmatpush2.msra.mxu0 0.0
    %671 = vmatprep.subr.mxu0 0.0
    %672 = vmatpush2.msra.mxu0 0.0
    %673 = vmatprep.subr.mxu0 0.0
    %674 = vmatpush2.msra.mxu0 0.0
    %675 = vmatprep.subr.mxu0 0.0
    %676 = vmatpush2.msra.mxu0 0.0
    %677 = vmatprep.subr.mxu0 0.0
    %678 = vmatpush2.msra.mxu0 0.0
    %679 = vmatprep.subr.mxu0 0.0
    %680 = vmatpush2.msra.mxu0 0.0
    %681 = vmatprep.subr.mxu0 0.0
    %682 = vmatpush2.msra.mxu0 0.0
    %683 = vmatprep.subr.mxu0 0.0
    %684 = vmatpush2.msra.mxu0 0.0
    %685 = vmatprep.subr.mxu0 0.0
    %686 = vmatpush2.msra.mxu0 0.0
    %687 = vmatprep.subr.mxu0 0.0
    %688 = vmatpush2.msra.mxu0 0.0
    %689 = vmatprep.subr.mxu0 0.0
    %690 = vmatpush2.msra.mxu0 0.0
    %691 = vmatprep.subr.mxu0 0.0
    %692 = vmatpush2.msra.mxu0 0.0
    %693 = vmatprep.subr.mxu0 0.0
    %694 = vmatpush2.msra.mxu0 0.0
    %695 = vmatprep.subr.mxu0 0.0
    %696 = vmatpush2.msra.mxu0 0.0
    %697 = vmatprep.subr.mxu0 0.0
    %698 = vmatpush2.msra.mxu0 0.0
    %699 = vmatprep.subr.mxu0 0.0
    %700 = vmatpush2.msra.mxu0 0.0
    %701 = vmatprep.mubr.f32.mxu0 0.0
    %702 = vmatmul.mubr.f32.gmra.mxu0 %v634
    %v703 = vpop.f32.mrf.mxu0
    %v704 = vadd.f32 %v288, %v703
    %v705 = vpop.f32.mrf.mxu0
    %v706 = vadd.f32 %v292, %v705
    %707 = vdwg.mxu0
    %708 = vmatprep.subr.mxu0 %v180
    %709 = vmatpush1.msra.mxu0 %v179
    %710 = vmatprep.subr.mxu0 %v176
    %711 = vmatpush1.msra.mxu0 %v175
    %712 = vmatprep.subr.mxu0 %v172
    %713 = vmatpush1.msra.mxu0 %v171
    %714 = vmatprep.subr.mxu0 %v168
    %715 = vmatpush1.msra.mxu0 %v167
    %716 = vmatprep.subr.mxu0 %v164
    %717 = vmatpush1.msra.mxu0 %v163
    %718 = vmatprep.subr.mxu0 %v160
    %719 = vmatpush1.msra.mxu0 %v159
    %720 = vmatprep.subr.mxu0 %v156
    %721 = vmatpush1.msra.mxu0 %v155
    %722 = vmatprep.subr.mxu0 %v152
    %723 = vmatpush1.msra.mxu0 %v151
    %724 = vmatprep.subr.mxu0 %v148
    %725 = vmatpush1.msra.mxu0 %v147
    %726 = vmatprep.subr.mxu0 %v144
    %727 = vmatpush1.msra.mxu0 %v143
    %728 = vmatprep.subr.mxu0 %v140
    %729 = vmatpush1.msra.mxu0 %v139
    %730 = vmatprep.subr.mxu0 %v136
    %731 = vmatpush1.msra.mxu0 %v135
    %732 = vmatprep.subr.mxu0 %v132
    %733 = vmatpush1.msra.mxu0 %v131
    %734 = vmatprep.subr.mxu0 %v128
    %735 = vmatpush1.msra.mxu0 %v127
    %736 = vmatprep.subr.mxu0 %v124
    %737 = vmatpush1.msra.mxu0 %v123
    %738 = vmatprep.subr.mxu0 %v120
    %739 = vmatpush1.msra.mxu0 %v119
    %740 = vmatprep.subr.mxu0 0.0
    %741 = vmatpush2.msra.mxu0 0.0
    %742 = vmatprep.subr.mxu0 0.0
    %743 = vmatpush2.msra.mxu0 0.0
    %744 = vmatprep.subr.mxu0 0.0
    %745 = vmatpush2.msra.mxu0 0.0
    %746 = vmatprep.subr.mxu0 0.0
    %747 = vmatpush2.msra.mxu0 0.0
    %748 = vmatprep.subr.mxu0 0.0
    %749 = vmatpush2.msra.mxu0 0.0
    %750 = vmatprep.subr.mxu0 0.0
    %751 = vmatpush2.msra.mxu0 0.0
    %752 = vmatprep.subr.mxu0 0.0
    %753 = vmatpush2.msra.mxu0 0.0
    %754 = vmatprep.subr.mxu0 0.0
    %755 = vmatpush2.msra.mxu0 0.0
    %756 = vmatprep.subr.mxu0 0.0
    %757 = vmatpush2.msra.mxu0 0.0
    %758 = vmatprep.subr.mxu0 0.0
    %759 = vmatpush2.msra.mxu0 0.0
    %760 = vmatprep.subr.mxu0 0.0
    %761 = vmatpush2.msra.mxu0 0.0
    %762 = vmatprep.subr.mxu0 0.0
    %763 = vmatpush2.msra.mxu0 0.0
    %764 = vmatprep.subr.mxu0 0.0
    %765 = vmatpush2.msra.mxu0 0.0
    %766 = vmatprep.subr.mxu0 0.0
    %767 = vmatpush2.msra.mxu0 0.0
    %768 = vmatprep.subr.mxu0 0.0
    %769 = vmatpush2.msra.mxu0 0.0
    %770 = vmatprep.subr.mxu0 0.0
    %771 = vmatpush2.msra.mxu0 0.0
    %772 = vmatprep.mubr.f32.mxu0 0.0
    %773 = vmatmul.mubr.f32.gmra.mxu0 %v634
    %v774 = vpop.f32.mrf.mxu0
    %v775 = vadd.f32 %v296, %v774
    %v776 = vpop.f32.mrf.mxu0
    %v777 = vadd.f32 %v300, %v776
    %778 = vdwg.mxu0
    %v779 = vxor.u32 %v704, 2147483648
    %v780 = vmul.f32 %v779, 1.442695
    %v781 = vpow.pop %v780
    %v782 = vadd.f32 %v781, 1.0
    %v783 = vrcp.pop %v782
    %v784 = vmul.f32 1.0, %v783
    %v785 = vxor.u32 %v706, 2147483648
    %v786 = vmul.f32 %v785, 1.442695
    %v787 = vpow.pop %v786
    %v788 = vadd.f32 %v787, 1.0
    %v789 = vrcp.pop %v788
    %v790 = vmul.f32 1.0, %v789
    %v791 = vtanh.pop %v775
    %v792 = vxor.u32 %v777, 2147483648
    %v793 = vmul.f32 %v792, 1.442695
    %v794 = vpow.pop %v793
    %v795 = vadd.f32 %v794, 1.0
    %v796 = vrcp.pop %v795
    %v797 = vmul.f32 1.0, %v796
    %v798 = vmul.f32 %v790, %v468
    %v799 = vmul.f32 %v784, %v791
    %v800 = vadd.f32 %v798, %v799
    %v801 = vtanh.pop %v800
    %v802 = vmul.f32 %v797, %v801
    %803 = vmatprep.subr.mxu0 0.0
    %804 = vmatpush1.msra.mxu0 %v197
    %805 = vmatprep.subr.mxu0 0.0
    %806 = vmatpush1.msra.mxu0 %v196
    %807 = vmatprep.subr.mxu0 0.0
    %808 = vmatpush1.msra.mxu0 %v195
    %809 = vmatprep.subr.mxu0 0.0
    %810 = vmatpush1.msra.mxu0 %v194
    %811 = vmatprep.subr.mxu0 0.0
    %812 = vmatpush1.msra.mxu0 %v193
    %813 = vmatprep.subr.mxu0 0.0
    %814 = vmatpush1.msra.mxu0 %v192
    %815 = vmatprep.subr.mxu0 0.0
    %816 = vmatpush1.msra.mxu0 %v191
    %817 = vmatprep.subr.mxu0 0.0
    %818 = vmatpush1.msra.mxu0 %v190
    %819 = vmatprep.subr.mxu0 0.0
    %820 = vmatpush1.msra.mxu0 %v189
    %821 = vmatprep.subr.mxu0 0.0
    %822 = vmatpush1.msra.mxu0 %v188
    %823 = vmatprep.subr.mxu0 0.0
    %824 = vmatpush1.msra.mxu0 %v187
    %825 = vmatprep.subr.mxu0 0.0
    %826 = vmatpush1.msra.mxu0 %v186
    %827 = vmatprep.subr.mxu0 0.0
    %828 = vmatpush1.msra.mxu0 %v185
    %829 = vmatprep.subr.mxu0 0.0
    %830 = vmatpush1.msra.mxu0 %v184
    %831 = vmatprep.subr.mxu0 0.0
    %832 = vmatpush1.msra.mxu0 %v183
    %833 = vmatprep.subr.mxu0 0.0
    %834 = vmatpush1.msra.mxu0 %v182
    %835 = vmatprep.subr.mxu0 0.0
    %836 = vmatpush2.msra.mxu0 0.0
    %837 = vmatprep.subr.mxu0 0.0
    %838 = vmatpush2.msra.mxu0 0.0
    %839 = vmatprep.subr.mxu0 0.0
    %840 = vmatpush2.msra.mxu0 0.0
    %841 = vmatprep.subr.mxu0 0.0
    %842 = vmatpush2.msra.mxu0 0.0
    %843 = vmatprep.subr.mxu0 0.0
    %844 = vmatpush2.msra.mxu0 0.0
    %845 = vmatprep.subr.mxu0 0.0
    %846 = vmatpush2.msra.mxu0 0.0
    %847 = vmatprep.subr.mxu0 0.0
    %848 = vmatpush2.msra.mxu0 0.0
    %849 = vmatprep.subr.mxu0 0.0
    %850 = vmatpush2.msra.mxu0 0.0
    %851 = vmatprep.subr.mxu0 0.0
    %852 = vmatpush2.msra.mxu0 0.0
    %853 = vmatprep.subr.mxu0 0.0
    %854 = vmatpush2.msra.mxu0 0.0
    %855 = vmatprep.subr.mxu0 0.0
    %856 = vmatpush2.msra.mxu0 0.0
    %857 = vmatprep.subr.mxu0 0.0
    %858 = vmatpush2.msra.mxu0 0.0
    %859 = vmatprep.subr.mxu0 0.0
    %860 = vmatpush2.msra.mxu0 0.0
    %861 = vmatprep.subr.mxu0 0.0
    %862 = vmatpush2.msra.mxu0 0.0
    %863 = vmatprep.subr.mxu0 0.0
    %864 = vmatpush2.msra.mxu0 0.0
    %865 = vmatprep.subr.mxu0 0.0
    %866 = vmatpush2.msra.mxu0 0.0
    %867 = vmatprep.mubr.f32.mxu0 0.0
    %868 = vmatmul.mubr.f32.gmra.mxu0 %v802
    %v869 = vpop.f32.mrf.mxu0
    %v870 = vadd.f32 %v475, %v869
    %v871 = vpop.f32.mrf.mxu0
    %872 = vdwg.mxu0
    %873 = vmax.xlane.f32.xlu0 %v870
    %v874 = vpop.xlane.xlu0 %873
    %v875 = vsub.f32 %v870, %v874
    %v876 = vmul.f32 %v875, 1.442695
    %v877 = vpow.pop %v876
    %878 = vadd.xlane.f32.xlu0 %v877
    %v879 = vpop.xlane.xlu0 %878
    %v880 = vlog2.pop %v879
    %v881 = vmul.f32 %v880, 0.6931472
    %v882 = vsub.f32 %v875, %v881
    %s883 = scalar_lea.vmem [#allocation15], 8
    %884 = vst [vmem:[%s883] sm:$0xff] %v882
    %885 = vset.pattern.permute.xlu0 2
    %886 = vperm.xlu0 %885, %v199
    %v887 = vpop.permute.xlu0 %886
    %vm888 = vcmp.eq.s32.totalorder %v201, %v887
    %v889 = vsel %vm888, 1, 0
    %v890 = vcvt.s32.f32 %v889
    %v892 = vsel %vm210, %v890, 0
    %894 = vmatprep.subr.mxu0 0.0
    %895 = vmatpush1.msra.mxu0 0.0
    %896 = vmatprep.subr.mxu0 0.0
    %897 = vmatpush1.msra.mxu0 0.0
    %898 = vmatprep.subr.mxu0 0.0
    %899 = vmatpush1.msra.mxu0 0.0
    %900 = vmatprep.subr.mxu0 0.0
    %901 = vmatpush1.msra.mxu0 0.0
    %902 = vmatprep.subr.mxu0 0.0
    %903 = vmatpush1.msra.mxu0 0.0
    %904 = vmatprep.subr.mxu0 0.0
    %905 = vmatpush1.msra.mxu0 0.0
    %906 = vmatprep.subr.mxu0 0.0
    %907 = vmatpush1.msra.mxu0 0.0
    %908 = vmatprep.subr.mxu0 0.0
    %909 = vmatpush1.msra.mxu0 0.0
    %910 = vmatprep.subr.mxu0 0.0
    %911 = vmatpush1.msra.mxu0 0.0
    %912 = vmatprep.subr.mxu0 0.0
    %913 = vmatpush1.msra.mxu0 0.0
    %914 = vmatprep.subr.mxu0 0.0
    %915 = vmatpush1.msra.mxu0 0.0
    %916 = vmatprep.subr.mxu0 0.0
    %917 = vmatpush1.msra.mxu0 0.0
    %918 = vmatprep.subr.mxu0 0.0
    %919 = vmatpush1.msra.mxu0 0.0
    %920 = vmatprep.subr.mxu0 0.0
    %921 = vmatpush1.msra.mxu0 0.0
    %922 = vmatprep.subr.mxu0 0.0
    %923 = vmatpush1.msra.mxu0 0.0
    %924 = vmatprep.subr.mxu0 0.0
    %925 = vmatpush1.msra.mxu0 %v116
    %926 = vmatprep.subr.mxu0 0.0
    %927 = vmatpush2.msra.mxu0 0.0
    %928 = vmatprep.subr.mxu0 0.0
    %929 = vmatpush2.msra.mxu0 0.0
    %930 = vmatprep.subr.mxu0 0.0
    %931 = vmatpush2.msra.mxu0 0.0
    %932 = vmatprep.subr.mxu0 0.0
    %933 = vmatpush2.msra.mxu0 0.0
    %934 = vmatprep.subr.mxu0 0.0
    %935 = vmatpush2.msra.mxu0 0.0
    %936 = vmatprep.subr.mxu0 0.0
    %937 = vmatpush2.msra.mxu0 0.0
    %938 = vmatprep.subr.mxu0 0.0
    %939 = vmatpush2.msra.mxu0 0.0
    %940 = vmatprep.subr.mxu0 0.0
    %941 = vmatpush2.msra.mxu0 0.0
    %942 = vmatprep.subr.mxu0 0.0
    %943 = vmatpush2.msra.mxu0 0.0
    %944 = vmatprep.subr.mxu0 0.0
    %945 = vmatpush2.msra.mxu0 0.0
    %946 = vmatprep.subr.mxu0 0.0
    %947 = vmatpush2.msra.mxu0 0.0
    %948 = vmatprep.subr.mxu0 0.0
    %949 = vmatpush2.msra.mxu0 0.0
    %950 = vmatprep.subr.mxu0 0.0
    %951 = vmatpush2.msra.mxu0 0.0
    %952 = vmatprep.subr.mxu0 0.0
    %953 = vmatpush2.msra.mxu0 0.0
    %954 = vmatprep.subr.mxu0 0.0
    %955 = vmatpush2.msra.mxu0 0.0
    %956 = vmatprep.subr.mxu0 0.0
    %957 = vmatpush2.msra.mxu0 0.0
    %958 = vmatprep.mubr.f32.mxu0 0.0
    %959 = vmatmul.mubr.f32.gmra.mxu0 %v892
    %v960 = vpop.f32.mrf.mxu0
    %v961 = vadd.f32 %v802, %v960
    %v962 = vpop.f32.mrf.mxu0
    %963 = vdwg.mxu0
    %964 = vmatprep.subr.mxu0 %v178
    %965 = vmatpush1.msra.mxu0 %v177
    %966 = vmatprep.subr.mxu0 %v174
    %967 = vmatpush1.msra.mxu0 %v173
    %968 = vmatprep.subr.mxu0 %v170
    %969 = vmatpush1.msra.mxu0 %v169
    %970 = vmatprep.subr.mxu0 %v166
    %971 = vmatpush1.msra.mxu0 %v165
    %972 = vmatprep.subr.mxu0 %v162
    %973 = vmatpush1.msra.mxu0 %v161
    %974 = vmatprep.subr.mxu0 %v158
    %975 = vmatpush1.msra.mxu0 %v157
    %976 = vmatprep.subr.mxu0 %v154
    %977 = vmatpush1.msra.mxu0 %v153
    %978 = vmatprep.subr.mxu0 %v150
    %979 = vmatpush1.msra.mxu0 %v149
    %980 = vmatprep.subr.mxu0 %v146
    %981 = vmatpush1.msra.mxu0 %v145
    %982 = vmatprep.subr.mxu0 %v142
    %983 = vmatpush1.msra.mxu0 %v141
    %984 = vmatprep.subr.mxu0 %v138
    %985 = vmatpush1.msra.mxu0 %v137
    %986 = vmatprep.subr.mxu0 %v134
    %987 = vmatpush1.msra.mxu0 %v133
    %988 = vmatprep.subr.mxu0 %v130
    %989 = vmatpush1.msra.mxu0 %v129
    %990 = vmatprep.subr.mxu0 %v126
    %991 = vmatpush1.msra.mxu0 %v125
    %992 = vmatprep.subr.mxu0 %v122
    %993 = vmatpush1.msra.mxu0 %v121
    %994 = vmatprep.subr.mxu0 %v118
    %995 = vmatpush1.msra.mxu0 %v117
    %996 = vmatprep.subr.mxu0 0.0
    %997 = vmatpush2.msra.mxu0 0.0
    %998 = vmatprep.subr.mxu0 0.0
    %999 = vmatpush2.msra.mxu0 0.0
    %1000 = vmatprep.subr.mxu0 0.0
    %1001 = vmatpush2.msra.mxu0 0.0
    %1002 = vmatprep.subr.mxu0 0.0
    %1003 = vmatpush2.msra.mxu0 0.0
    %1004 = vmatprep.subr.mxu0 0.0
    %1005 = vmatpush2.msra.mxu0 0.0
    %1006 = vmatprep.subr.mxu0 0.0
    %1007 = vmatpush2.msra.mxu0 0.0
    %1008 = vmatprep.subr.mxu0 0.0
    %1009 = vmatpush2.msra.mxu0 0.0
    %1010 = vmatprep.subr.mxu0 0.0
    %1011 = vmatpush2.msra.mxu0 0.0
    %1012 = vmatprep.subr.mxu0 0.0
    %1013 = vmatpush2.msra.mxu0 0.0
    %1014 = vmatprep.subr.mxu0 0.0
    %1015 = vmatpush2.msra.mxu0 0.0
    %1016 = vmatprep.subr.mxu0 0.0
    %1017 = vmatpush2.msra.mxu0 0.0
    %1018 = vmatprep.subr.mxu0 0.0
    %1019 = vmatpush2.msra.mxu0 0.0
    %1020 = vmatprep.subr.mxu0 0.0
    %1021 = vmatpush2.msra.mxu0 0.0
    %1022 = vmatprep.subr.mxu0 0.0
    %1023 = vmatpush2.msra.mxu0 0.0
    %1024 = vmatprep.subr.mxu0 0.0
    %1025 = vmatpush2.msra.mxu0 0.0
    %1026 = vmatprep.subr.mxu0 0.0
    %1027 = vmatpush2.msra.mxu0 0.0
    %1028 = vmatprep.mubr.f32.mxu0 0.0
    %1029 = vmatmul.mubr.f32.gmra.mxu0 %v961
    %v1030 = vpop.f32.mrf.mxu0
    %v1031 = vadd.f32 %v288, %v1030
    %v1032 = vpop.f32.mrf.mxu0
    %v1033 = vadd.f32 %v292, %v1032
    %1034 = vdwg.mxu0
    %1035 = vmatprep.subr.mxu0 %v180
    %1036 = vmatpush1.msra.mxu0 %v179
    %1037 = vmatprep.subr.mxu0 %v176
    %1038 = vmatpush1.msra.mxu0 %v175
    %1039 = vmatprep.subr.mxu0 %v172
    %1040 = vmatpush1.msra.mxu0 %v171
    %1041 = vmatprep.subr.mxu0 %v168
    %1042 = vmatpush1.msra.mxu0 %v167
    %1043 = vmatprep.subr.mxu0 %v164
    %1044 = vmatpush1.msra.mxu0 %v163
    %1045 = vmatprep.subr.mxu0 %v160
    %1046 = vmatpush1.msra.mxu0 %v159
    %1047 = vmatprep.subr.mxu0 %v156
    %1048 = vmatpush1.msra.mxu0 %v155
    %1049 = vmatprep.subr.mxu0 %v152
    %1050 = vmatpush1.msra.mxu0 %v151
    %1051 = vmatprep.subr.mxu0 %v148
    %1052 = vmatpush1.msra.mxu0 %v147
    %1053 = vmatprep.subr.mxu0 %v144
    %1054 = vmatpush1.msra.mxu0 %v143
    %1055 = vmatprep.subr.mxu0 %v140
    %1056 = vmatpush1.msra.mxu0 %v139
    %1057 = vmatprep.subr.mxu0 %v136
    %1058 = vmatpush1.msra.mxu0 %v135
    %1059 = vmatprep.subr.mxu0 %v132
    %1060 = vmatpush1.msra.mxu0 %v131
    %1061 = vmatprep.subr.mxu0 %v128
    %1062 = vmatpush1.msra.mxu0 %v127
    %1063 = vmatprep.subr.mxu0 %v124
    %1064 = vmatpush1.msra.mxu0 %v123
    %1065 = vmatprep.subr.mxu0 %v120
    %1066 = vmatpush1.msra.mxu0 %v119
    %1067 = vmatprep.subr.mxu0 0.0
    %1068 = vmatpush2.msra.mxu0 0.0
    %1069 = vmatprep.subr.mxu0 0.0
    %1070 = vmatpush2.msra.mxu0 0.0
    %1071 = vmatprep.subr.mxu0 0.0
    %1072 = vmatpush2.msra.mxu0 0.0
    %1073 = vmatprep.subr.mxu0 0.0
    %1074 = vmatpush2.msra.mxu0 0.0
    %1075 = vmatprep.subr.mxu0 0.0
    %1076 = vmatpush2.msra.mxu0 0.0
    %1077 = vmatprep.subr.mxu0 0.0
    %1078 = vmatpush2.msra.mxu0 0.0
    %1079 = vmatprep.subr.mxu0 0.0
    %1080 = vmatpush2.msra.mxu0 0.0
    %1081 = vmatprep.subr.mxu0 0.0
    %1082 = vmatpush2.msra.mxu0 0.0
    %1083 = vmatprep.subr.mxu0 0.0
    %1084 = vmatpush2.msra.mxu0 0.0
    %1085 = vmatprep.subr.mxu0 0.0
    %1086 = vmatpush2.msra.mxu0 0.0
    %1087 = vmatprep.subr.mxu0 0.0
    %1088 = vmatpush2.msra.mxu0 0.0
    %1089 = vmatprep.subr.mxu0 0.0
    %1090 = vmatpush2.msra.mxu0 0.0
    %1091 = vmatprep.subr.mxu0 0.0
    %1092 = vmatpush2.msra.mxu0 0.0
    %1093 = vmatprep.subr.mxu0 0.0
    %1094 = vmatpush2.msra.mxu0 0.0
    %1095 = vmatprep.subr.mxu0 0.0
    %1096 = vmatpush2.msra.mxu0 0.0
    %1097 = vmatprep.subr.mxu0 0.0
    %1098 = vmatpush2.msra.mxu0 0.0
    %1099 = vmatprep.mubr.f32.mxu0 0.0
    %1100 = vmatmul.mubr.f32.gmra.mxu0 %v961
    %v1101 = vpop.f32.mrf.mxu0
    %v1102 = vadd.f32 %v296, %v1101
    %v1103 = vpop.f32.mrf.mxu0
    %v1104 = vadd.f32 %v300, %v1103
    %1105 = vdwg.mxu0
    %v1106 = vxor.u32 %v1031, 2147483648
    %v1107 = vmul.f32 %v1106, 1.442695
    %v1108 = vpow.pop %v1107
    %v1109 = vadd.f32 %v1108, 1.0
    %v1110 = vrcp.pop %v1109
    %v1111 = vmul.f32 1.0, %v1110
    %v1112 = vxor.u32 %v1033, 2147483648
    %v1113 = vmul.f32 %v1112, 1.442695
    %v1114 = vpow.pop %v1113
    %v1115 = vadd.f32 %v1114, 1.0
    %v1116 = vrcp.pop %v1115
    %v1117 = vmul.f32 1.0, %v1116
    %v1118 = vtanh.pop %v1102
    %v1119 = vxor.u32 %v1104, 2147483648
    %v1120 = vmul.f32 %v1119, 1.442695
    %v1121 = vpow.pop %v1120
    %v1122 = vadd.f32 %v1121, 1.0
    %v1123 = vrcp.pop %v1122
    %v1124 = vmul.f32 1.0, %v1123
    %v1125 = vmul.f32 %v1117, %v800
    %v1126 = vmul.f32 %v1111, %v1118
    %v1127 = vadd.f32 %v1125, %v1126
    %v1128 = vtanh.pop %v1127
    %v1129 = vmul.f32 %v1124, %v1128
    %1130 = vmatprep.subr.mxu0 0.0
    %1131 = vmatpush1.msra.mxu0 %v197
    %1132 = vmatprep.subr.mxu0 0.0
    %1133 = vmatpush1.msra.mxu0 %v196
    %1134 = vmatprep.subr.mxu0 0.0
    %1135 = vmatpush1.msra.mxu0 %v195
    %1136 = vmatprep.subr.mxu0 0.0
    %1137 = vmatpush1.msra.mxu0 %v194
    %1138 = vmatprep.subr.mxu0 0.0
    %1139 = vmatpush1.msra.mxu0 %v193
    %1140 = vmatprep.subr.mxu0 0.0
    %1141 = vmatpush1.msra.mxu0 %v192
    %1142 = vmatprep.subr.mxu0 0.0
    %1143 = vmatpush1.msra.mxu0 %v191
    %1144 = vmatprep.subr.mxu0 0.0
    %1145 = vmatpush1.msra.mxu0 %v190
    %1146 = vmatprep.subr.mxu0 0.0
    %1147 = vmatpush1.msra.mxu0 %v189
    %1148 = vmatprep.subr.mxu0 0.0
    %1149 = vmatpush1.msra.mxu0 %v188
    %1150 = vmatprep.subr.mxu0 0.0
    %1151 = vmatpush1.msra.mxu0 %v187
    %1152 = vmatprep.subr.mxu0 0.0
    %1153 = vmatpush1.msra.mxu0 %v186
    %1154 = vmatprep.subr.mxu0 0.0
    %1155 = vmatpush1.msra.mxu0 %v185
    %1156 = vmatprep.subr.mxu0 0.0
    %1157 = vmatpush1.msra.mxu0 %v184
    %1158 = vmatprep.subr.mxu0 0.0
    %1159 = vmatpush1.msra.mxu0 %v183
    %1160 = vmatprep.subr.mxu0 0.0
    %1161 = vmatpush1.msra.mxu0 %v182
    %1162 = vmatprep.subr.mxu0 0.0
    %1163 = vmatpush2.msra.mxu0 0.0
    %1164 = vmatprep.subr.mxu0 0.0
    %1165 = vmatpush2.msra.mxu0 0.0
    %1166 = vmatprep.subr.mxu0 0.0
    %1167 = vmatpush2.msra.mxu0 0.0
    %1168 = vmatprep.subr.mxu0 0.0
    %1169 = vmatpush2.msra.mxu0 0.0
    %1170 = vmatprep.subr.mxu0 0.0
    %1171 = vmatpush2.msra.mxu0 0.0
    %1172 = vmatprep.subr.mxu0 0.0
    %1173 = vmatpush2.msra.mxu0 0.0
    %1174 = vmatprep.subr.mxu0 0.0
    %1175 = vmatpush2.msra.mxu0 0.0
    %1176 = vmatprep.subr.mxu0 0.0
    %1177 = vmatpush2.msra.mxu0 0.0
    %1178 = vmatprep.subr.mxu0 0.0
    %1179 = vmatpush2.msra.mxu0 0.0
    %1180 = vmatprep.subr.mxu0 0.0
    %1181 = vmatpush2.msra.mxu0 0.0
    %1182 = vmatprep.subr.mxu0 0.0
    %1183 = vmatpush2.msra.mxu0 0.0
    %1184 = vmatprep.subr.mxu0 0.0
    %1185 = vmatpush2.msra.mxu0 0.0
    %1186 = vmatprep.subr.mxu0 0.0
    %1187 = vmatpush2.msra.mxu0 0.0
    %1188 = vmatprep.subr.mxu0 0.0
    %1189 = vmatpush2.msra.mxu0 0.0
    %1190 = vmatprep.subr.mxu0 0.0
    %1191 = vmatpush2.msra.mxu0 0.0
    %1192 = vmatprep.subr.mxu0 0.0
    %1193 = vmatpush2.msra.mxu0 0.0
    %1194 = vmatprep.mubr.f32.mxu0 0.0
    %1195 = vmatmul.mubr.f32.gmra.mxu0 %v1129
    %v1196 = vpop.f32.mrf.mxu0
    %v1197 = vadd.f32 %v475, %v1196
    %v1198 = vpop.f32.mrf.mxu0
    %1199 = vdwg.mxu0
    %1200 = vmax.xlane.f32.xlu0 %v1197
    %v1201 = vpop.xlane.xlu0 %1200
    %v1202 = vsub.f32 %v1197, %v1201
    %v1203 = vmul.f32 %v1202, 1.442695
    %v1204 = vpow.pop %v1203
    %1205 = vadd.xlane.f32.xlu0 %v1204
    %v1206 = vpop.xlane.xlu0 %1205
    %v1207 = vlog2.pop %v1206
    %v1208 = vmul.f32 %v1207, 0.6931472
    %v1209 = vsub.f32 %v1202, %v1208
    %s1210 = scalar_lea.vmem [#allocation15], 16
    %1211 = vst [vmem:[%s1210] sm:$0xff] %v1209
    %1212 = vset.pattern.permute.xlu0 3
    %1213 = vperm.xlu0 %1212, %v199
    %v1214 = vpop.permute.xlu0 %1213
    %vm1215 = vcmp.eq.s32.totalorder %v201, %v1214
    %v1216 = vsel %vm1215, 1, 0
    %v1217 = vcvt.s32.f32 %v1216
    %v1219 = vsel %vm210, %v1217, 0
    %1221 = vmatprep.subr.mxu0 0.0
    %1222 = vmatpush1.msra.mxu0 0.0
    %1223 = vmatprep.subr.mxu0 0.0
    %1224 = vmatpush1.msra.mxu0 0.0
    %1225 = vmatprep.subr.mxu0 0.0
    %1226 = vmatpush1.msra.mxu0 0.0
    %1227 = vmatprep.subr.mxu0 0.0
    %1228 = vmatpush1.msra.mxu0 0.0
    %1229 = vmatprep.subr.mxu0 0.0
    %1230 = vmatpush1.msra.mxu0 0.0
    %1231 = vmatprep.subr.mxu0 0.0
    %1232 = vmatpush1.msra.mxu0 0.0
    %1233 = vmatprep.subr.mxu0 0.0
    %1234 = vmatpush1.msra.mxu0 0.0
    %1235 = vmatprep.subr.mxu0 0.0
    %1236 = vmatpush1.msra.mxu0 0.0
    %1237 = vmatprep.subr.mxu0 0.0
    %1238 = vmatpush1.msra.mxu0 0.0
    %1239 = vmatprep.subr.mxu0 0.0
    %1240 = vmatpush1.msra.mxu0 0.0
    %1241 = vmatprep.subr.mxu0 0.0
    %1242 = vmatpush1.msra.mxu0 0.0
    %1243 = vmatprep.subr.mxu0 0.0
    %1244 = vmatpush1.msra.mxu0 0.0
    %1245 = vmatprep.subr.mxu0 0.0
    %1246 = vmatpush1.msra.mxu0 0.0
    %1247 = vmatprep.subr.mxu0 0.0
    %1248 = vmatpush1.msra.mxu0 0.0
    %1249 = vmatprep.subr.mxu0 0.0
    %1250 = vmatpush1.msra.mxu0 0.0
    %1251 = vmatprep.subr.mxu0 0.0
    %1252 = vmatpush1.msra.mxu0 %v116
    %1253 = vmatprep.subr.mxu0 0.0
    %1254 = vmatpush2.msra.mxu0 0.0
    %1255 = vmatprep.subr.mxu0 0.0
    %1256 = vmatpush2.msra.mxu0 0.0
    %1257 = vmatprep.subr.mxu0 0.0
    %1258 = vmatpush2.msra.mxu0 0.0
    %1259 = vmatprep.subr.mxu0 0.0
    %1260 = vmatpush2.msra.mxu0 0.0
    %1261 = vmatprep.subr.mxu0 0.0
    %1262 = vmatpush2.msra.mxu0 0.0
    %1263 = vmatprep.subr.mxu0 0.0
    %1264 = vmatpush2.msra.mxu0 0.0
    %1265 = vmatprep.subr.mxu0 0.0
    %1266 = vmatpush2.msra.mxu0 0.0
    %1267 = vmatprep.subr.mxu0 0.0
    %1268 = vmatpush2.msra.mxu0 0.0
    %1269 = vmatprep.subr.mxu0 0.0
    %1270 = vmatpush2.msra.mxu0 0.0
    %1271 = vmatprep.subr.mxu0 0.0
    %1272 = vmatpush2.msra.mxu0 0.0
    %1273 = vmatprep.subr.mxu0 0.0
    %1274 = vmatpush2.msra.mxu0 0.0
    %1275 = vmatprep.subr.mxu0 0.0
    %1276 = vmatpush2.msra.mxu0 0.0
    %1277 = vmatprep.subr.mxu0 0.0
    %1278 = vmatpush2.msra.mxu0 0.0
    %1279 = vmatprep.subr.mxu0 0.0
    %1280 = vmatpush2.msra.mxu0 0.0
    %1281 = vmatprep.subr.mxu0 0.0
    %1282 = vmatpush2.msra.mxu0 0.0
    %1283 = vmatprep.subr.mxu0 0.0
    %1284 = vmatpush2.msra.mxu0 0.0
    %1285 = vmatprep.mubr.f32.mxu0 0.0
    %1286 = vmatmul.mubr.f32.gmra.mxu0 %v1219
    %v1287 = vpop.f32.mrf.mxu0
    %v1288 = vadd.f32 %v1129, %v1287
    %v1289 = vpop.f32.mrf.mxu0
    %1290 = vdwg.mxu0
    %1291 = vmatprep.subr.mxu0 %v178
    %1292 = vmatpush1.msra.mxu0 %v177
    %1293 = vmatprep.subr.mxu0 %v174
    %1294 = vmatpush1.msra.mxu0 %v173
    %1295 = vmatprep.subr.mxu0 %v170
    %1296 = vmatpush1.msra.mxu0 %v169
    %1297 = vmatprep.subr.mxu0 %v166
    %1298 = vmatpush1.msra.mxu0 %v165
    %1299 = vmatprep.subr.mxu0 %v162
    %1300 = vmatpush1.msra.mxu0 %v161
    %1301 = vmatprep.subr.mxu0 %v158
    %1302 = vmatpush1.msra.mxu0 %v157
    %1303 = vmatprep.subr.mxu0 %v154
    %1304 = vmatpush1.msra.mxu0 %v153
    %1305 = vmatprep.subr.mxu0 %v150
    %1306 = vmatpush1.msra.mxu0 %v149
    %1307 = vmatprep.subr.mxu0 %v146
    %1308 = vmatpush1.msra.mxu0 %v145
    %1309 = vmatprep.subr.mxu0 %v142
    %1310 = vmatpush1.msra.mxu0 %v141
    %1311 = vmatprep.subr.mxu0 %v138
    %1312 = vmatpush1.msra.mxu0 %v137
    %1313 = vmatprep.subr.mxu0 %v134
    %1314 = vmatpush1.msra.mxu0 %v133
    %1315 = vmatprep.subr.mxu0 %v130
    %1316 = vmatpush1.msra.mxu0 %v129
    %1317 = vmatprep.subr.mxu0 %v126
    %1318 = vmatpush1.msra.mxu0 %v125
    %1319 = vmatprep.subr.mxu0 %v122
    %1320 = vmatpush1.msra.mxu0 %v121
    %1321 = vmatprep.subr.mxu0 %v118
    %1322 = vmatpush1.msra.mxu0 %v117
    %1323 = vmatprep.subr.mxu0 0.0
    %1324 = vmatpush2.msra.mxu0 0.0
    %1325 = vmatprep.subr.mxu0 0.0
    %1326 = vmatpush2.msra.mxu0 0.0
    %1327 = vmatprep.subr.mxu0 0.0
    %1328 = vmatpush2.msra.mxu0 0.0
    %1329 = vmatprep.subr.mxu0 0.0
    %1330 = vmatpush2.msra.mxu0 0.0
    %1331 = vmatprep.subr.mxu0 0.0
    %1332 = vmatpush2.msra.mxu0 0.0
    %1333 = vmatprep.subr.mxu0 0.0
    %1334 = vmatpush2.msra.mxu0 0.0
    %1335 = vmatprep.subr.mxu0 0.0
    %1336 = vmatpush2.msra.mxu0 0.0
    %1337 = vmatprep.subr.mxu0 0.0
    %1338 = vmatpush2.msra.mxu0 0.0
    %1339 = vmatprep.subr.mxu0 0.0
    %1340 = vmatpush2.msra.mxu0 0.0
    %1341 = vmatprep.subr.mxu0 0.0
    %1342 = vmatpush2.msra.mxu0 0.0
    %1343 = vmatprep.subr.mxu0 0.0
    %1344 = vmatpush2.msra.mxu0 0.0
    %1345 = vmatprep.subr.mxu0 0.0
    %1346 = vmatpush2.msra.mxu0 0.0
    %1347 = vmatprep.subr.mxu0 0.0
    %1348 = vmatpush2.msra.mxu0 0.0
    %1349 = vmatprep.subr.mxu0 0.0
    %1350 = vmatpush2.msra.mxu0 0.0
    %1351 = vmatprep.subr.mxu0 0.0
    %1352 = vmatpush2.msra.mxu0 0.0
    %1353 = vmatprep.subr.mxu0 0.0
    %1354 = vmatpush2.msra.mxu0 0.0
    %1355 = vmatprep.mubr.f32.mxu0 0.0
    %1356 = vmatmul.mubr.f32.gmra.mxu0 %v1288
    %v1357 = vpop.f32.mrf.mxu0
    %v1358 = vadd.f32 %v288, %v1357
    %v1359 = vpop.f32.mrf.mxu0
    %v1360 = vadd.f32 %v292, %v1359
    %1361 = vdwg.mxu0
    %1362 = vmatprep.subr.mxu0 %v180
    %1363 = vmatpush1.msra.mxu0 %v179
    %1364 = vmatprep.subr.mxu0 %v176
    %1365 = vmatpush1.msra.mxu0 %v175
    %1366 = vmatprep.subr.mxu0 %v172
    %1367 = vmatpush1.msra.mxu0 %v171
    %1368 = vmatprep.subr.mxu0 %v168
    %1369 = vmatpush1.msra.mxu0 %v167
    %1370 = vmatprep.subr.mxu0 %v164
    %1371 = vmatpush1.msra.mxu0 %v163
    %1372 = vmatprep.subr.mxu0 %v160
    %1373 = vmatpush1.msra.mxu0 %v159
    %1374 = vmatprep.subr.mxu0 %v156
    %1375 = vmatpush1.msra.mxu0 %v155
    %1376 = vmatprep.subr.mxu0 %v152
    %1377 = vmatpush1.msra.mxu0 %v151
    %1378 = vmatprep.subr.mxu0 %v148
    %1379 = vmatpush1.msra.mxu0 %v147
    %1380 = vmatprep.subr.mxu0 %v144
    %1381 = vmatpush1.msra.mxu0 %v143
    %1382 = vmatprep.subr.mxu0 %v140
    %1383 = vmatpush1.msra.mxu0 %v139
    %1384 = vmatprep.subr.mxu0 %v136
    %1385 = vmatpush1.msra.mxu0 %v135
    %1386 = vmatprep.subr.mxu0 %v132
    %1387 = vmatpush1.msra.mxu0 %v131
    %1388 = vmatprep.subr.mxu0 %v128
    %1389 = vmatpush1.msra.mxu0 %v127
    %1390 = vmatprep.subr.mxu0 %v124
    %1391 = vmatpush1.msra.mxu0 %v123
    %1392 = vmatprep.subr.mxu0 %v120
    %1393 = vmatpush1.msra.mxu0 %v119
    %1394 = vmatprep.subr.mxu0 0.0
    %1395 = vmatpush2.msra.mxu0 0.0
    %1396 = vmatprep.subr.mxu0 0.0
    %1397 = vmatpush2.msra.mxu0 0.0
    %1398 = vmatprep.subr.mxu0 0.0
    %1399 = vmatpush2.msra.mxu0 0.0
    %1400 = vmatprep.subr.mxu0 0.0
    %1401 = vmatpush2.msra.mxu0 0.0
    %1402 = vmatprep.subr.mxu0 0.0
    %1403 = vmatpush2.msra.mxu0 0.0
    %1404 = vmatprep.subr.mxu0 0.0
    %1405 = vmatpush2.msra.mxu0 0.0
    %1406 = vmatprep.subr.mxu0 0.0
    %1407 = vmatpush2.msra.mxu0 0.0
    %1408 = vmatprep.subr.mxu0 0.0
    %1409 = vmatpush2.msra.mxu0 0.0
    %1410 = vmatprep.subr.mxu0 0.0
    %1411 = vmatpush2.msra.mxu0 0.0
    %1412 = vmatprep.subr.mxu0 0.0
    %1413 = vmatpush2.msra.mxu0 0.0
    %1414 = vmatprep.subr.mxu0 0.0
    %1415 = vmatpush2.msra.mxu0 0.0
    %1416 = vmatprep.subr.mxu0 0.0
    %1417 = vmatpush2.msra.mxu0 0.0
    %1418 = vmatprep.subr.mxu0 0.0
    %1419 = vmatpush2.msra.mxu0 0.0
    %1420 = vmatprep.subr.mxu0 0.0
    %1421 = vmatpush2.msra.mxu0 0.0
    %1422 = vmatprep.subr.mxu0 0.0
    %1423 = vmatpush2.msra.mxu0 0.0
    %1424 = vmatprep.subr.mxu0 0.0
    %1425 = vmatpush2.msra.mxu0 0.0
    %1426 = vmatprep.mubr.f32.mxu0 0.0
    %1427 = vmatmul.mubr.f32.gmra.mxu0 %v1288
    %v1428 = vpop.f32.mrf.mxu0
    %v1429 = vadd.f32 %v296, %v1428
    %v1430 = vpop.f32.mrf.mxu0
    %v1431 = vadd.f32 %v300, %v1430
    %1432 = vdwg.mxu0
    %v1433 = vxor.u32 %v1358, 2147483648
    %v1434 = vmul.f32 %v1433, 1.442695
    %v1435 = vpow.pop %v1434
    %v1436 = vadd.f32 %v1435, 1.0
    %v1437 = vrcp.pop %v1436
    %v1438 = vmul.f32 1.0, %v1437
    %v1439 = vxor.u32 %v1360, 2147483648
    %v1440 = vmul.f32 %v1439, 1.442695
    %v1441 = vpow.pop %v1440
    %v1442 = vadd.f32 %v1441, 1.0
    %v1443 = vrcp.pop %v1442
    %v1444 = vmul.f32 1.0, %v1443
    %v1445 = vtanh.pop %v1429
    %v1446 = vxor.u32 %v1431, 2147483648
    %v1447 = vmul.f32 %v1446, 1.442695
    %v1448 = vpow.pop %v1447
    %v1449 = vadd.f32 %v1448, 1.0
    %v1450 = vrcp.pop %v1449
    %v1451 = vmul.f32 1.0, %v1450
    %v1452 = vmul.f32 %v1444, %v1127
    %v1453 = vmul.f32 %v1438, %v1445
    %v1454 = vadd.f32 %v1452, %v1453
    %v1455 = vtanh.pop %v1454
    %v1456 = vmul.f32 %v1451, %v1455
    %1457 = vmatprep.subr.mxu0 0.0
    %1458 = vmatpush1.msra.mxu0 %v197
    %1459 = vmatprep.subr.mxu0 0.0
    %1460 = vmatpush1.msra.mxu0 %v196
    %1461 = vmatprep.subr.mxu0 0.0
    %1462 = vmatpush1.msra.mxu0 %v195
    %1463 = vmatprep.subr.mxu0 0.0
    %1464 = vmatpush1.msra.mxu0 %v194
    %1465 = vmatprep.subr.mxu0 0.0
    %1466 = vmatpush1.msra.mxu0 %v193
    %1467 = vmatprep.subr.mxu0 0.0
    %1468 = vmatpush1.msra.mxu0 %v192
    %1469 = vmatprep.subr.mxu0 0.0
    %1470 = vmatpush1.msra.mxu0 %v191
    %1471 = vmatprep.subr.mxu0 0.0
    %1472 = vmatpush1.msra.mxu0 %v190
    %1473 = vmatprep.subr.mxu0 0.0
    %1474 = vmatpush1.msra.mxu0 %v189
    %1475 = vmatprep.subr.mxu0 0.0
    %1476 = vmatpush1.msra.mxu0 %v188
    %1477 = vmatprep.subr.mxu0 0.0
    %1478 = vmatpush1.msra.mxu0 %v187
    %1479 = vmatprep.subr.mxu0 0.0
    %1480 = vmatpush1.msra.mxu0 %v186
    %1481 = vmatprep.subr.mxu0 0.0
    %1482 = vmatpush1.msra.mxu0 %v185
    %1483 = vmatprep.subr.mxu0 0.0
    %1484 = vmatpush1.msra.mxu0 %v184
    %1485 = vmatprep.subr.mxu0 0.0
    %1486 = vmatpush1.msra.mxu0 %v183
    %1487 = vmatprep.subr.mxu0 0.0
    %1488 = vmatpush1.msra.mxu0 %v182
    %1489 = vmatprep.subr.mxu0 0.0
    %1490 = vmatpush2.msra.mxu0 0.0
    %1491 = vmatprep.subr.mxu0 0.0
    %1492 = vmatpush2.msra.mxu0 0.0
    %1493 = vmatprep.subr.mxu0 0.0
    %1494 = vmatpush2.msra.mxu0 0.0
    %1495 = vmatprep.subr.mxu0 0.0
    %1496 = vmatpush2.msra.mxu0 0.0
    %1497 = vmatprep.subr.mxu0 0.0
    %1498 = vmatpush2.msra.mxu0 0.0
    %1499 = vmatprep.subr.mxu0 0.0
    %1500 = vmatpush2.msra.mxu0 0.0
    %1501 = vmatprep.subr.mxu0 0.0
    %1502 = vmatpush2.msra.mxu0 0.0
    %1503 = vmatprep.subr.mxu0 0.0
    %1504 = vmatpush2.msra.mxu0 0.0
    %1505 = vmatprep.subr.mxu0 0.0
    %1506 = vmatpush2.msra.mxu0 0.0
    %1507 = vmatprep.subr.mxu0 0.0
    %1508 = vmatpush2.msra.mxu0 0.0
    %1509 = vmatprep.subr.mxu0 0.0
    %1510 = vmatpush2.msra.mxu0 0.0
    %1511 = vmatprep.subr.mxu0 0.0
    %1512 = vmatpush2.msra.mxu0 0.0
    %1513 = vmatprep.subr.mxu0 0.0
    %1514 = vmatpush2.msra.mxu0 0.0
    %1515 = vmatprep.subr.mxu0 0.0
    %1516 = vmatpush2.msra.mxu0 0.0
    %1517 = vmatprep.subr.mxu0 0.0
    %1518 = vmatpush2.msra.mxu0 0.0
    %1519 = vmatprep.subr.mxu0 0.0
    %1520 = vmatpush2.msra.mxu0 0.0
    %1521 = vmatprep.mubr.f32.mxu0 0.0
    %1522 = vmatmul.mubr.f32.gmra.mxu0 %v1456
    %v1523 = vpop.f32.mrf.mxu0
    %v1524 = vadd.f32 %v475, %v1523
    %v1525 = vpop.f32.mrf.mxu0
    %1526 = vdwg.mxu0
    %1527 = vmax.xlane.f32.xlu0 %v1524
    %v1528 = vpop.xlane.xlu0 %1527
    %v1529 = vsub.f32 %v1524, %v1528
    %v1530 = vmul.f32 %v1529, 1.442695
    %v1531 = vpow.pop %v1530
    %1532 = vadd.xlane.f32.xlu0 %v1531
    %v1533 = vpop.xlane.xlu0 %1532
    %v1534 = vlog2.pop %v1533
    %v1535 = vmul.f32 %v1534, 0.6931472
    %v1536 = vsub.f32 %v1529, %v1535
    %s1537 = scalar_lea.vmem [#allocation15], 24
    %1538 = vst [vmem:[%s1537] sm:$0xff] %v1536
    %1539 = vset.pattern.permute.xlu0 4
    %1540 = vperm.xlu0 %1539, %v199
    %v1541 = vpop.permute.xlu0 %1540
    %vm1542 = vcmp.eq.s32.totalorder %v201, %v1541
    %v1543 = vsel %vm1542, 1, 0
    %v1544 = vcvt.s32.f32 %v1543
    %v1546 = vsel %vm210, %v1544, 0
    %1548 = vmatprep.subr.mxu0 0.0
    %1549 = vmatpush1.msra.mxu0 0.0
    %1550 = vmatprep.subr.mxu0 0.0
    %1551 = vmatpush1.msra.mxu0 0.0
    %1552 = vmatprep.subr.mxu0 0.0
    %1553 = vmatpush1.msra.mxu0 0.0
    %1554 = vmatprep.subr.mxu0 0.0
    %1555 = vmatpush1.msra.mxu0 0.0
    %1556 = vmatprep.subr.mxu0 0.0
    %1557 = vmatpush1.msra.mxu0 0.0
    %1558 = vmatprep.subr.mxu0 0.0
    %1559 = vmatpush1.msra.mxu0 0.0
    %1560 = vmatprep.subr.mxu0 0.0
    %1561 = vmatpush1.msra.mxu0 0.0
    %1562 = vmatprep.subr.mxu0 0.0
    %1563 = vmatpush1.msra.mxu0 0.0
    %1564 = vmatprep.subr.mxu0 0.0
    %1565 = vmatpush1.msra.mxu0 0.0
    %1566 = vmatprep.subr.mxu0 0.0
    %1567 = vmatpush1.msra.mxu0 0.0
    %1568 = vmatprep.subr.mxu0 0.0
    %1569 = vmatpush1.msra.mxu0 0.0
    %1570 = vmatprep.subr.mxu0 0.0
    %1571 = vmatpush1.msra.mxu0 0.0
    %1572 = vmatprep.subr.mxu0 0.0
    %1573 = vmatpush1.msra.mxu0 0.0
    %1574 = vmatprep.subr.mxu0 0.0
    %1575 = vmatpush1.msra.mxu0 0.0
    %1576 = vmatprep.subr.mxu0 0.0
    %1577 = vmatpush1.msra.mxu0 0.0
    %1578 = vmatprep.subr.mxu0 0.0
    %1579 = vmatpush1.msra.mxu0 %v116
    %1580 = vmatprep.subr.mxu0 0.0
    %1581 = vmatpush2.msra.mxu0 0.0
    %1582 = vmatprep.subr.mxu0 0.0
    %1583 = vmatpush2.msra.mxu0 0.0
    %1584 = vmatprep.subr.mxu0 0.0
    %1585 = vmatpush2.msra.mxu0 0.0
    %1586 = vmatprep.subr.mxu0 0.0
    %1587 = vmatpush2.msra.mxu0 0.0
    %1588 = vmatprep.subr.mxu0 0.0
    %1589 = vmatpush2.msra.mxu0 0.0
    %1590 = vmatprep.subr.mxu0 0.0
    %1591 = vmatpush2.msra.mxu0 0.0
    %1592 = vmatprep.subr.mxu0 0.0
    %1593 = vmatpush2.msra.mxu0 0.0
    %1594 = vmatprep.subr.mxu0 0.0
    %1595 = vmatpush2.msra.mxu0 0.0
    %1596 = vmatprep.subr.mxu0 0.0
    %1597 = vmatpush2.msra.mxu0 0.0
    %1598 = vmatprep.subr.mxu0 0.0
    %1599 = vmatpush2.msra.mxu0 0.0
    %1600 = vmatprep.subr.mxu0 0.0
    %1601 = vmatpush2.msra.mxu0 0.0
    %1602 = vmatprep.subr.mxu0 0.0
    %1603 = vmatpush2.msra.mxu0 0.0
    %1604 = vmatprep.subr.mxu0 0.0
    %1605 = vmatpush2.msra.mxu0 0.0
    %1606 = vmatprep.subr.mxu0 0.0
    %1607 = vmatpush2.msra.mxu0 0.0
    %1608 = vmatprep.subr.mxu0 0.0
    %1609 = vmatpush2.msra.mxu0 0.0
    %1610 = vmatprep.subr.mxu0 0.0
    %1611 = vmatpush2.msra.mxu0 0.0
    %1612 = vmatprep.mubr.f32.mxu0 0.0
    %1613 = vmatmul.mubr.f32.gmra.mxu0 %v1546
    %v1614 = vpop.f32.mrf.mxu0
    %v1615 = vadd.f32 %v1456, %v1614
    %v1616 = vpop.f32.mrf.mxu0
    %1617 = vdwg.mxu0
    %1618 = vmatprep.subr.mxu0 %v178
    %1619 = vmatpush1.msra.mxu0 %v177
    %1620 = vmatprep.subr.mxu0 %v174
    %1621 = vmatpush1.msra.mxu0 %v173
    %1622 = vmatprep.subr.mxu0 %v170
    %1623 = vmatpush1.msra.mxu0 %v169
    %1624 = vmatprep.subr.mxu0 %v166
    %1625 = vmatpush1.msra.mxu0 %v165
    %1626 = vmatprep.subr.mxu0 %v162
    %1627 = vmatpush1.msra.mxu0 %v161
    %1628 = vmatprep.subr.mxu0 %v158
    %1629 = vmatpush1.msra.mxu0 %v157
    %1630 = vmatprep.subr.mxu0 %v154
    %1631 = vmatpush1.msra.mxu0 %v153
    %1632 = vmatprep.subr.mxu0 %v150
    %1633 = vmatpush1.msra.mxu0 %v149
    %1634 = vmatprep.subr.mxu0 %v146
    %1635 = vmatpush1.msra.mxu0 %v145
    %1636 = vmatprep.subr.mxu0 %v142
    %1637 = vmatpush1.msra.mxu0 %v141
    %1638 = vmatprep.subr.mxu0 %v138
    %1639 = vmatpush1.msra.mxu0 %v137
    %1640 = vmatprep.subr.mxu0 %v134
    %1641 = vmatpush1.msra.mxu0 %v133
    %1642 = vmatprep.subr.mxu0 %v130
    %1643 = vmatpush1.msra.mxu0 %v129
    %1644 = vmatprep.subr.mxu0 %v126
    %1645 = vmatpush1.msra.mxu0 %v125
    %1646 = vmatprep.subr.mxu0 %v122
    %1647 = vmatpush1.msra.mxu0 %v121
    %1648 = vmatprep.subr.mxu0 %v118
    %1649 = vmatpush1.msra.mxu0 %v117
    %1650 = vmatprep.subr.mxu0 0.0
    %1651 = vmatpush2.msra.mxu0 0.0
    %1652 = vmatprep.subr.mxu0 0.0
    %1653 = vmatpush2.msra.mxu0 0.0
    %1654 = vmatprep.subr.mxu0 0.0
    %1655 = vmatpush2.msra.mxu0 0.0
    %1656 = vmatprep.subr.mxu0 0.0
    %1657 = vmatpush2.msra.mxu0 0.0
    %1658 = vmatprep.subr.mxu0 0.0
    %1659 = vmatpush2.msra.mxu0 0.0
    %1660 = vmatprep.subr.mxu0 0.0
    %1661 = vmatpush2.msra.mxu0 0.0
    %1662 = vmatprep.subr.mxu0 0.0
    %1663 = vmatpush2.msra.mxu0 0.0
    %1664 = vmatprep.subr.mxu0 0.0
    %1665 = vmatpush2.msra.mxu0 0.0
    %1666 = vmatprep.subr.mxu0 0.0
    %1667 = vmatpush2.msra.mxu0 0.0
    %1668 = vmatprep.subr.mxu0 0.0
    %1669 = vmatpush2.msra.mxu0 0.0
    %1670 = vmatprep.subr.mxu0 0.0
    %1671 = vmatpush2.msra.mxu0 0.0
    %1672 = vmatprep.subr.mxu0 0.0
    %1673 = vmatpush2.msra.mxu0 0.0
    %1674 = vmatprep.subr.mxu0 0.0
    %1675 = vmatpush2.msra.mxu0 0.0
    %1676 = vmatprep.subr.mxu0 0.0
    %1677 = vmatpush2.msra.mxu0 0.0
    %1678 = vmatprep.subr.mxu0 0.0
    %1679 = vmatpush2.msra.mxu0 0.0
    %1680 = vmatprep.subr.mxu0 0.0
    %1681 = vmatpush2.msra.mxu0 0.0
    %1682 = vmatprep.mubr.f32.mxu0 0.0
    %1683 = vmatmul.mubr.f32.gmra.mxu0 %v1615
    %v1684 = vpop.f32.mrf.mxu0
    %v1685 = vadd.f32 %v288, %v1684
    %v1686 = vpop.f32.mrf.mxu0
    %v1687 = vadd.f32 %v292, %v1686
    %1688 = vdwg.mxu0
    %1689 = vmatprep.subr.mxu0 %v180
    %1690 = vmatpush1.msra.mxu0 %v179
    %1691 = vmatprep.subr.mxu0 %v176
    %1692 = vmatpush1.msra.mxu0 %v175
    %1693 = vmatprep.subr.mxu0 %v172
    %1694 = vmatpush1.msra.mxu0 %v171
    %1695 = vmatprep.subr.mxu0 %v168
    %1696 = vmatpush1.msra.mxu0 %v167
    %1697 = vmatprep.subr.mxu0 %v164
    %1698 = vmatpush1.msra.mxu0 %v163
    %1699 = vmatprep.subr.mxu0 %v160
    %1700 = vmatpush1.msra.mxu0 %v159
    %1701 = vmatprep.subr.mxu0 %v156
    %1702 = vmatpush1.msra.mxu0 %v155
    %1703 = vmatprep.subr.mxu0 %v152
    %1704 = vmatpush1.msra.mxu0 %v151
    %1705 = vmatprep.subr.mxu0 %v148
    %1706 = vmatpush1.msra.mxu0 %v147
    %1707 = vmatprep.subr.mxu0 %v144
    %1708 = vmatpush1.msra.mxu0 %v143
    %1709 = vmatprep.subr.mxu0 %v140
    %1710 = vmatpush1.msra.mxu0 %v139
    %1711 = vmatprep.subr.mxu0 %v136
    %1712 = vmatpush1.msra.mxu0 %v135
    %1713 = vmatprep.subr.mxu0 %v132
    %1714 = vmatpush1.msra.mxu0 %v131
    %1715 = vmatprep.subr.mxu0 %v128
    %1716 = vmatpush1.msra.mxu0 %v127
    %1717 = vmatprep.subr.mxu0 %v124
    %1718 = vmatpush1.msra.mxu0 %v123
    %1719 = vmatprep.subr.mxu0 %v120
    %1720 = vmatpush1.msra.mxu0 %v119
    %1721 = vmatprep.subr.mxu0 0.0
    %1722 = vmatpush2.msra.mxu0 0.0
    %1723 = vmatprep.subr.mxu0 0.0
    %1724 = vmatpush2.msra.mxu0 0.0
    %1725 = vmatprep.subr.mxu0 0.0
    %1726 = vmatpush2.msra.mxu0 0.0
    %1727 = vmatprep.subr.mxu0 0.0
    %1728 = vmatpush2.msra.mxu0 0.0
    %1729 = vmatprep.subr.mxu0 0.0
    %1730 = vmatpush2.msra.mxu0 0.0
    %1731 = vmatprep.subr.mxu0 0.0
    %1732 = vmatpush2.msra.mxu0 0.0
    %1733 = vmatprep.subr.mxu0 0.0
    %1734 = vmatpush2.msra.mxu0 0.0
    %1735 = vmatprep.subr.mxu0 0.0
    %1736 = vmatpush2.msra.mxu0 0.0
    %1737 = vmatprep.subr.mxu0 0.0
    %1738 = vmatpush2.msra.mxu0 0.0
    %1739 = vmatprep.subr.mxu0 0.0
    %1740 = vmatpush2.msra.mxu0 0.0
    %1741 = vmatprep.subr.mxu0 0.0
    %1742 = vmatpush2.msra.mxu0 0.0
    %1743 = vmatprep.subr.mxu0 0.0
    %1744 = vmatpush2.msra.mxu0 0.0
    %1745 = vmatprep.subr.mxu0 0.0
    %1746 = vmatpush2.msra.mxu0 0.0
    %1747 = vmatprep.subr.mxu0 0.0
    %1748 = vmatpush2.msra.mxu0 0.0
    %1749 = vmatprep.subr.mxu0 0.0
    %1750 = vmatpush2.msra.mxu0 0.0
    %1751 = vmatprep.subr.mxu0 0.0
    %1752 = vmatpush2.msra.mxu0 0.0
    %1753 = vmatprep.mubr.f32.mxu0 0.0
    %1754 = vmatmul.mubr.f32.gmra.mxu0 %v1615
    %v1755 = vpop.f32.mrf.mxu0
    %v1756 = vadd.f32 %v296, %v1755
    %v1757 = vpop.f32.mrf.mxu0
    %v1758 = vadd.f32 %v300, %v1757
    %1759 = vdwg.mxu0
    %v1760 = vxor.u32 %v1685, 2147483648
    %v1761 = vmul.f32 %v1760, 1.442695
    %v1762 = vpow.pop %v1761
    %v1763 = vadd.f32 %v1762, 1.0
    %v1764 = vrcp.pop %v1763
    %v1765 = vmul.f32 1.0, %v1764
    %v1766 = vxor.u32 %v1687, 2147483648
    %v1767 = vmul.f32 %v1766, 1.442695
    %v1768 = vpow.pop %v1767
    %v1769 = vadd.f32 %v1768, 1.0
    %v1770 = vrcp.pop %v1769
    %v1771 = vmul.f32 1.0, %v1770
    %v1772 = vtanh.pop %v1756
    %v1773 = vxor.u32 %v1758, 2147483648
    %v1774 = vmul.f32 %v1773, 1.442695
    %v1775 = vpow.pop %v1774
    %v1776 = vadd.f32 %v1775, 1.0
    %v1777 = vrcp.pop %v1776
    %v1778 = vmul.f32 1.0, %v1777
    %v1779 = vmul.f32 %v1771, %v1454
    %v1780 = vmul.f32 %v1765, %v1772
    %v1781 = vadd.f32 %v1779, %v1780
    %v1782 = vtanh.pop %v1781
    %v1783 = vmul.f32 %v1778, %v1782
    %1784 = vmatprep.subr.mxu0 0.0
    %1785 = vmatpush1.msra.mxu0 %v197
    %1786 = vmatprep.subr.mxu0 0.0
    %1787 = vmatpush1.msra.mxu0 %v196
    %1788 = vmatprep.subr.mxu0 0.0
    %1789 = vmatpush1.msra.mxu0 %v195
    %1790 = vmatprep.subr.mxu0 0.0
    %1791 = vmatpush1.msra.mxu0 %v194
    %1792 = vmatprep.subr.mxu0 0.0
    %1793 = vmatpush1.msra.mxu0 %v193
    %1794 = vmatprep.subr.mxu0 0.0
    %1795 = vmatpush1.msra.mxu0 %v192
    %1796 = vmatprep.subr.mxu0 0.0
    %1797 = vmatpush1.msra.mxu0 %v191
    %1798 = vmatprep.subr.mxu0 0.0
    %1799 = vmatpush1.msra.mxu0 %v190
    %1800 = vmatprep.subr.mxu0 0.0
    %1801 = vmatpush1.msra.mxu0 %v189
    %1802 = vmatprep.subr.mxu0 0.0
    %1803 = vmatpush1.msra.mxu0 %v188
    %1804 = vmatprep.subr.mxu0 0.0
    %1805 = vmatpush1.msra.mxu0 %v187
    %1806 = vmatprep.subr.mxu0 0.0
    %1807 = vmatpush1.msra.mxu0 %v186
    %1808 = vmatprep.subr.mxu0 0.0
    %1809 = vmatpush1.msra.mxu0 %v185
    %1810 = vmatprep.subr.mxu0 0.0
    %1811 = vmatpush1.msra.mxu0 %v184
    %1812 = vmatprep.subr.mxu0 0.0
    %1813 = vmatpush1.msra.mxu0 %v183
    %1814 = vmatprep.subr.mxu0 0.0
    %1815 = vmatpush1.msra.mxu0 %v182
    %1816 = vmatprep.subr.mxu0 0.0
    %1817 = vmatpush2.msra.mxu0 0.0
    %1818 = vmatprep.subr.mxu0 0.0
    %1819 = vmatpush2.msra.mxu0 0.0
    %1820 = vmatprep.subr.mxu0 0.0
    %1821 = vmatpush2.msra.mxu0 0.0
    %1822 = vmatprep.subr.mxu0 0.0
    %1823 = vmatpush2.msra.mxu0 0.0
    %1824 = vmatprep.subr.mxu0 0.0
    %1825 = vmatpush2.msra.mxu0 0.0
    %1826 = vmatprep.subr.mxu0 0.0
    %1827 = vmatpush2.msra.mxu0 0.0
    %1828 = vmatprep.subr.mxu0 0.0
    %1829 = vmatpush2.msra.mxu0 0.0
    %1830 = vmatprep.subr.mxu0 0.0
    %1831 = vmatpush2.msra.mxu0 0.0
    %1832 = vmatprep.subr.mxu0 0.0
    %1833 = vmatpush2.msra.mxu0 0.0
    %1834 = vmatprep.subr.mxu0 0.0
    %1835 = vmatpush2.msra.mxu0 0.0
    %1836 = vmatprep.subr.mxu0 0.0
    %1837 = vmatpush2.msra.mxu0 0.0
    %1838 = vmatprep.subr.mxu0 0.0
    %1839 = vmatpush2.msra.mxu0 0.0
    %1840 = vmatprep.subr.mxu0 0.0
    %1841 = vmatpush2.msra.mxu0 0.0
    %1842 = vmatprep.subr.mxu0 0.0
    %1843 = vmatpush2.msra.mxu0 0.0
    %1844 = vmatprep.subr.mxu0 0.0
    %1845 = vmatpush2.msra.mxu0 0.0
    %1846 = vmatprep.subr.mxu0 0.0
    %1847 = vmatpush2.msra.mxu0 0.0
    %1848 = vmatprep.mubr.f32.mxu0 0.0
    %1849 = vmatmul.mubr.f32.gmra.mxu0 %v1783
    %v1850 = vpop.f32.mrf.mxu0
    %v1851 = vadd.f32 %v475, %v1850
    %v1852 = vpop.f32.mrf.mxu0
    %1853 = vdwg.mxu0
    %1854 = vmax.xlane.f32.xlu0 %v1851
    %v1855 = vpop.xlane.xlu0 %1854
    %v1856 = vsub.f32 %v1851, %v1855
    %v1857 = vmul.f32 %v1856, 1.442695
    %v1858 = vpow.pop %v1857
    %1859 = vadd.xlane.f32.xlu0 %v1858
    %v1860 = vpop.xlane.xlu0 %1859
    %v1861 = vlog2.pop %v1860
    %v1862 = vmul.f32 %v1861, 0.6931472
    %v1863 = vsub.f32 %v1856, %v1862
    %s1864 = scalar_lea.vmem [#allocation15], 32
    %1865 = vst [vmem:[%s1864] sm:$0xff] %v1863
    %1866 = vst [vmem:[#allocation2] sm:$0xff] %v1783
    %1867 = vst [vmem:[#allocation3] sm:$0xff] %v1781
    // Predicated region
    $region62: #{tpu_custom_call.1} parent=1 // pred_check
      %p1868 = pneg %p108
    $region63: #{tpu_custom_call.1} parent=1 // pred_check_branch
      %1870 = sbr.rel (%p1868) target = $region65
    $region64: #{tpu_custom_call.1} parent=1 // pred_region
      %1871 = vst [vmem:[#allocation16] sm:$0xff] %v1783
      %1872 = vst [vmem:[#allocation18] sm:$0xff] %v1781
    $region65: #{tpu_custom_call.1} parent=1 // pred_fallthru
      _
    // Predicated region
    $region66: #{tpu_custom_call.1} parent=1 // pred_check
      _
    $region67: #{tpu_custom_call.1} parent=1 // pred_check_branch
      %1874 = sbr.rel (0) target = $region69
    $region68: #{tpu_custom_call.1} parent=1 // pred_region
      %s1876 = ssub.s32 1024, 1024
      %1877 = vsyncadd [#allocation6], %s1876
      %s1878 = sshll.u32 [#allocation15], 4
      %s1879 = int_to_ptr.vmem [resolvable:$true] %s1878
      %1884 = dma.vmem_to_hbm [thread:$0]  %s1879, 1024, %s8, [#allocation6], 128, 128, 8
    $region69: #{tpu_custom_call.1} parent=1 // pred_fallthru
      _
    // Predicated region
    $region70: #{tpu_custom_call.1} parent=1 // pred_check
      _
    $region71: #{tpu_custom_call.1} parent=1 // pred_check_branch
      %1886 = sbr.rel (0) target = $region73
    $region72: #{tpu_custom_call.1} parent=1 // pred_region
      %s1888 = ssub.s32 128, 128
      %1889 = vsyncadd [#allocation17], %s1888
      %s1891 = sshll.u32 [#allocation16], 4
      %s1892 = int_to_ptr.vmem [resolvable:$true] %s1891
      %1894 = dma.vmem_to_hbm [thread:$0]  %s1892, 128, %s9, [#allocation17]
    $region73: #{tpu_custom_call.1} parent=1 // pred_fallthru
      _
    // Predicated region
    $region74: #{tpu_custom_call.1} parent=1 // pred_check
      _
    $region75: #{tpu_custom_call.1} parent=1 // pred_check_branch
      %1896 = sbr.rel (0) target = $region77
    $region76: #{tpu_custom_call.1} parent=1 // pred_region
      %s1898 = ssub.s32 128, 128
      %1899 = vsyncadd [#allocation17], %s1898
      %s1901 = sshll.u32 [#allocation18], 4
      %s1902 = int_to_ptr.vmem [resolvable:$true] %s1901
      %1904 = dma.vmem_to_hbm [thread:$0]  %s1902, 128, %s10, [#allocation17]
    $region77: #{tpu_custom_call.1} parent=1 // pred_fallthru
      _
    // Predicated region
    $region78: #{tpu_custom_call.1} parent=1 // pred_check
      _
    $region79: #{tpu_custom_call.1} parent=1 // pred_check_branch
      %1906 = sbr.rel (0) target = $region81
    $region80: #{tpu_custom_call.1} parent=1 // pred_region
      %1907 = dma.done [#allocation6], 1024
    $region81: #{tpu_custom_call.1} parent=1 // pred_fallthru
      _
    // Predicated region
    $region82: #{tpu_custom_call.1} parent=1 // pred_check
      _
    $region83: #{tpu_custom_call.1} parent=1 // pred_check_branch
      %1909 = sbr.rel (0) target = $region85
    $region84: #{tpu_custom_call.1} parent=1 // pred_region
      %1910 = dma.done [#allocation17], 128
    $region85: #{tpu_custom_call.1} parent=1 // pred_fallthru
      _
    // Predicated region
    $region86: #{tpu_custom_call.1} parent=1 // pred_check
      _
    $region87: #{tpu_custom_call.1} parent=1 // pred_check_branch
      %1912 = sbr.rel (0) target = $region89
    $region88: #{tpu_custom_call.1} parent=1 // pred_region
      %1913 = dma.done [#allocation17], 128
    $region89: #{tpu_custom_call.1} parent=1 // pred_fallthru
      _
    %1914 = vsyncpa [#allocation5], 1
    %1915 = vsyncpa [#allocation8], 1
    %1916 = vsyncpa [#allocation11], 1
    %1917 = vsyncpa [#allocation14], 1
    %1918 = vsyncpa [#allocation6], 1
    %1919 = vsyncpa [#allocation17], 1

</llo_original>
